<compile_context>
chip_gen: v6e
topology: v6e:2x2x1
jax: 0.10.0
libtpu: 0.0.40
codegen_flags: <defaults>
</compile_context>

<pallas_src>
import functools

import jax
import jax.numpy as jnp
from jax import lax
from jax.experimental import pallas as pl
from jax.experimental.pallas import tpu as pltpu


# -----------------------------------------------------------------------------
# Fused kernel: encode -> reparameterize -> decode -> per-tile loss sums
# -----------------------------------------------------------------------------
def vae_fused_kernel(x_ref, eps_ref, w_enc_ref, b_enc_ref, w_dec_ref, b_dec_ref,
                     slab_ref, loss_ref, *, n_valid):
    x = x_ref[...]                                   # (tb, D) f32
    eps = eps_ref[...]                               # (tb, L) f32
    tb = x.shape[0]
    latent = eps.shape[-1]

    # --- encode: single fused (D, 2L) head, bf16 on the MXU, f32 accumulate ---
    enc = jnp.dot(x.astype(jnp.bfloat16), w_enc_ref[...],
                  preferred_element_type=jnp.float32) + b_enc_ref[...]
    mu = enc[:, :latent]                             # (tb, L)
    logvar = enc[:, latent:]                         # (tb, L)

    # --- reparameterize: z = mu + eps * exp(0.5*logvar) ---
    std = jnp.exp(0.5 * logvar)
    z = mu + eps * std

    # --- decode ---
    recon = jnp.dot(z.astype(jnp.bfloat16), w_dec_ref[...],
                    preferred_element_type=jnp.float32) + b_dec_ref[...]

    # --- forward outputs: one contiguous (tb, D+3L) store (no zero padding) ---
    slab_ref[...] = jnp.concatenate([recon, z, mu, logvar], axis=1)

    # --- per-tile loss sums (padded batch rows masked out) ---
    i = pl.program_id(0)
    row = i * tb + lax.broadcasted_iota(jnp.int32, (tb, 1), 0)
    valid = (row < n_valid).astype(jnp.float32)      # (tb, 1)

    diff = recon - x
    row_sq = jnp.sum(diff * diff, axis=1, keepdims=True)            # MSE numerator
    exp_lv = jnp.exp(logvar)                                         # exact exp(logvar)
    row_kl = -0.5 * jnp.sum(1.0 + logvar - mu * mu - exp_lv,
                            axis=1, keepdims=True)
    row_quat = 1.0 - jnp.sum(recon * x, axis=1, keepdims=True)

    tile_sq = jnp.sum(row_sq * valid)
    tile_kl = jnp.sum(row_kl * valid)
    tile_quat = jnp.sum(row_quat * valid)

    # Write the three tile scalars to sublanes 0/1/2 of a dense (8,128) block.
    sub = lax.broadcasted_iota(jnp.int32, (8, 128), 0)
    loss_ref[0] = jnp.where(sub == 0, tile_sq,
                   jnp.where(sub == 1, tile_kl,
                    jnp.where(sub == 2, tile_quat, 0.0)))


# -----------------------------------------------------------------------------
# Wrapper: pads batch, runs the fused kernel over a parallel batch grid,
# unpacks the slab and finishes the tiny (n_tiles, 3) loss reduction.
# -----------------------------------------------------------------------------
def vae_forward_with_losses(x, eps, params, *, tb=512):
    B, D = x.shape
    L = eps.shape[1]

    # Clamp the tile to the (8-rounded) batch so tiny demos don't over-pad;
    # keep it a multiple of 8 (sublane requirement).
    tb = max(8, min(tb, pl.cdiv(B, 8) * 8))
    assert tb % 8 == 0

    b_pad = pl.cdiv(B, tb) * tb
    if b_pad != B:
        x = jnp.pad(x, ((0, b_pad - B), (0, 0)))
        eps = jnp.pad(eps, ((0, b_pad - B), (0, 0)))

    slab_w = D + 3 * L                   # recon | z | mu | logvar
    n_tiles = b_pad // tb
    grid = (n_tiles,)

    kernel = functools.partial(vae_fused_kernel, n_valid=B)

    slab, loss = pl.pallas_call(
        kernel,
        out_shape=(
            jax.ShapeDtypeStruct((b_pad, slab_w), jnp.float32),
            jax.ShapeDtypeStruct((n_tiles, 8, 128), jnp.float32),
        ),
        grid_spec=pltpu.PrefetchScalarGridSpec(
            num_scalar_prefetch=0,
            grid=grid,
            in_specs=[
                pl.BlockSpec((tb, D), lambda i: (i, 0)),        # x (per-tile)
                pl.BlockSpec((tb, L), lambda i: (i, 0)),        # eps (per-tile)
                pl.BlockSpec((D, 2 * L), lambda i: (0, 0)),     # w_enc (pinned)
                pl.BlockSpec((1, 2 * L), lambda i: (0, 0)),     # b_enc (pinned)
                pl.BlockSpec((L, D), lambda i: (0, 0)),         # w_dec (pinned)
                pl.BlockSpec((1, D), lambda i: (0, 0)),         # b_dec (pinned)
            ],
            out_specs=(
                pl.BlockSpec((tb, slab_w), lambda i: (i, 0)),   # forward slab
                pl.BlockSpec((1, 8, 128), lambda i: (i, 0, 0)),  # per-tile losses
            ),
        ),
        compiler_params=pltpu.CompilerParams(
            dimension_semantics=("parallel",)),
    )(x, eps, params["w_enc"], params["b_enc"], params["w_dec"], params["b_dec"])

    recon = slab[:B, :D]
    z = slab[:B, D:D + L]
    mu = slab[:B, D + L:D + 2 * L]
    logvar = slab[:B, D + 2 * L:D + 3 * L]

    mse = jnp.sum(loss[:, 0, 0]) / jnp.float32(B * D)   # F.mse_loss (mean)
    kl = jnp.sum(loss[:, 1, 0])
    quat = jnp.sum(loss[:, 2, 0])
    return recon, z, mu, logvar, mse, kl, quat


# -----------------------------------------------------------------------------
# Deterministic synthetic parameters (bf16 weights, f32 biases).
# -----------------------------------------------------------------------------
def make_params(key, input_shape, latent_shape):
    k1, k2, k3 = jax.random.split(key, 3)
    s_in = 1.0 / jnp.sqrt(jnp.float32(input_shape))
    s_lat = 1.0 / jnp.sqrt(jnp.float32(latent_shape))
    w_mu = jax.random.normal(k1, (input_shape, latent_shape), jnp.float32) * s_in
    w_lv = jax.random.normal(k2, (input_shape, latent_shape), jnp.float32) * s_in
    w_dec = jax.random.normal(k3, (latent_shape, input_shape), jnp.float32) * s_lat
    return {
        "w_enc": jnp.concatenate([w_mu, w_lv], axis=1).astype(jnp.bfloat16),
        "b_enc": jnp.zeros((1, 2 * latent_shape), jnp.float32),
        "w_dec": w_dec.astype(jnp.bfloat16),
        "b_dec": jnp.zeros((1, input_shape), jnp.float32),
    }


if __name__ == "__main__":
    # Multi-tile batch (non-multiple of the tile to exercise pad masking).
    B, D_IN, LATENT, TB = 1000, 32, 16, 256

    key = jax.random.PRNGKey(0)
    k_x, k_eps, k_p = jax.random.split(key, 3)

    x = jax.random.normal(k_x, (B, D_IN), jnp.float32)
    eps = jax.random.normal(k_eps, (B, LATENT), jnp.float32)   # torch.randn_like(std)
    params = make_params(k_p, D_IN, LATENT)

    recon, z, mu, logvar, mse, kl, quat = vae_forward_with_losses(
        x, eps, params, tb=TB)
    jax.block_until_ready((recon, z, mu, logvar, mse, kl, quat))

    # --- plain-JAX reference following the same bf16 matmul / f32 accumulate path ---
    enc_ref = jnp.dot(x.astype(jnp.bfloat16), params["w_enc"],
                      preferred_element_type=jnp.float32) + params["b_enc"]
    mu_ref, lv_ref = enc_ref[:, :LATENT], enc_ref[:, LATENT:]
    z_ref = mu_ref + eps * jnp.exp(0.5 * lv_ref)
    recon_ref = jnp.dot(z_ref.astype(jnp.bfloat16), params["w_dec"],
                        preferred_element_type=jnp.float32) + params["b_dec"]
    mse_ref = jnp.mean((recon_ref - x) ** 2)
    kl_ref = -0.5 * jnp.sum(1.0 + lv_ref - mu_ref ** 2 - jnp.exp(lv_ref))
    quat_ref = jnp.sum(1.0 - jnp.sum(recon_ref * x, axis=1))

    assert jnp.allclose(recon, recon_ref, atol=2e-2, rtol=2e-2)
    assert jnp.allclose(z, z_ref, atol=2e-2, rtol=2e-2)
    assert jnp.allclose(mu, mu_ref, atol=2e-2, rtol=2e-2)
    assert jnp.allclose(logvar, lv_ref, atol=2e-2, rtol=2e-2)
    assert jnp.allclose(mse, mse_ref, atol=1e-2, rtol=1e-2)
    assert jnp.allclose(kl, kl_ref, atol=1.0, rtol=2e-2)
    assert jnp.allclose(quat, quat_ref, atol=1.0, rtol=2e-2)

    print("KERNEL_OK")
</pallas_src>

<mosaic_0001>
module attributes {stable_mosaic.version = 11 : i64} {
  func.func @vae_fused_kernel(%arg0: i32, %arg1: memref<256x32xf32, #tpu.memory_space<vmem>>, %arg2: memref<256x16xf32, #tpu.memory_space<vmem>>, %arg3: memref<32x32xbf16, #tpu.memory_space<vmem>>, %arg4: memref<1x32xf32, #tpu.memory_space<vmem>>, %arg5: memref<16x32xbf16, #tpu.memory_space<vmem>>, %arg6: memref<1x32xf32, #tpu.memory_space<vmem>>, %arg7: memref<256x80xf32, #tpu.memory_space<vmem>>, %arg8: memref<1x8x128xf32, #tpu.memory_space<vmem>>) attributes {dimension_semantics = [#tpu.dimension_semantics<parallel>], iteration_bounds = array<i64: 4>, scalar_prefetch = 0 : i64, scratch_operands = 0 : i64, tpu.core_type = #tpu.core_type<tc>, window_params = [{transform_indices = @transform_0, window_bounds = array<i64: 256, 32>}, {transform_indices = @transform_1, window_bounds = array<i64: 256, 16>}, {pipeline_mode = #tpu.pipeline_mode<synchronous>, transform_indices = @transform_2, window_bounds = array<i64: 32, 32>}, {pipeline_mode = #tpu.pipeline_mode<synchronous>, transform_indices = @transform_3, window_bounds = array<i64: 1, 32>}, {pipeline_mode = #tpu.pipeline_mode<synchronous>, transform_indices = @transform_4, window_bounds = array<i64: 16, 32>}, {pipeline_mode = #tpu.pipeline_mode<synchronous>, transform_indices = @transform_5, window_bounds = array<i64: 1, 32>}, {transform_indices = @transform_6, window_bounds = array<i64: 256, 80>}, {transform_indices = @transform_7, window_bounds = array<i64: 1, 8, 128>}]} {
    %c0 = arith.constant 0 : index
    %c0_0 = arith.constant 0 : index
    %0 = vector.load %arg1[%c0, %c0_0] : memref<256x32xf32, #tpu.memory_space<vmem>>, vector<256x32xf32>
    %c0_1 = arith.constant 0 : index
    %c0_2 = arith.constant 0 : index
    %1 = vector.load %arg2[%c0_1, %c0_2] : memref<256x16xf32, #tpu.memory_space<vmem>>, vector<256x16xf32>
    %2 = arith.truncf %0 : vector<256x32xf32> to vector<256x32xbf16>
    %c0_3 = arith.constant 0 : index
    %c0_4 = arith.constant 0 : index
    %3 = vector.load %arg3[%c0_3, %c0_4] : memref<32x32xbf16, #tpu.memory_space<vmem>>, vector<32x32xbf16>
    %cst = arith.constant dense<0.000000e+00> : vector<256x32xf32>
    %4 = tpu.matmul %2, %3, %cst {dimension_numbers = #tpu.dot_dimension_numbers<[1], [0], [0], [1], [0, 0, 1, 1], [], []>} : vector<256x32xbf16>, vector<32x32xbf16>, vector<256x32xf32> -> vector<256x32xf32>
    %c0_5 = arith.constant 0 : index
    %c0_6 = arith.constant 0 : index
    %5 = vector.load %arg4[%c0_5, %c0_6] : memref<1x32xf32, #tpu.memory_space<vmem>>, vector<1x32xf32>
    %6 = vector.broadcast %5 : vector<1x32xf32> to vector<256x32xf32>
    %7 = arith.addf %4, %6 : vector<256x32xf32>
    %8 = vector.extract_strided_slice %7 {offsets = [0, 0], sizes = [256, 16], strides = [1, 1]} : vector<256x32xf32> to vector<256x16xf32>
    %9 = vector.extract_strided_slice %7 {offsets = [0, 16], sizes = [256, 16], strides = [1, 1]} : vector<256x32xf32> to vector<256x16xf32>
    %cst_7 = arith.constant 5.000000e-01 : f32
    %10 = vector.broadcast %cst_7 : f32 to vector<256x16xf32>
    %11 = arith.mulf %10, %9 : vector<256x16xf32>
    %12 = math.exp %11 : vector<256x16xf32>
    %13 = arith.mulf %1, %12 : vector<256x16xf32>
    %14 = arith.addf %8, %13 : vector<256x16xf32>
    %15 = arith.truncf %14 : vector<256x16xf32> to vector<256x16xbf16>
    %c0_8 = arith.constant 0 : index
    %c0_9 = arith.constant 0 : index
    %16 = vector.load %arg5[%c0_8, %c0_9] : memref<16x32xbf16, #tpu.memory_space<vmem>>, vector<16x32xbf16>
    %cst_10 = arith.constant dense<0.000000e+00> : vector<256x32xf32>
    %17 = tpu.matmul %15, %16, %cst_10 {dimension_numbers = #tpu.dot_dimension_numbers<[1], [0], [0], [1], [0, 0, 1, 1], [], []>} : vector<256x16xbf16>, vector<16x32xbf16>, vector<256x32xf32> -> vector<256x32xf32>
    %c0_11 = arith.constant 0 : index
    %c0_12 = arith.constant 0 : index
    %18 = vector.load %arg6[%c0_11, %c0_12] : memref<1x32xf32, #tpu.memory_space<vmem>>, vector<1x32xf32>
    %19 = vector.broadcast %18 : vector<1x32xf32> to vector<256x32xf32>
    %20 = arith.addf %17, %19 : vector<256x32xf32>
    %21 = tpu.concatenate %20, %14, %8, %9 in 1 : vector<256x32xf32>, vector<256x16xf32>, vector<256x16xf32>, vector<256x16xf32> -> vector<256x80xf32>
    %c0_13 = arith.constant 0 : index
    %c0_14 = arith.constant 0 : index
    %22 = vector.load %arg7[%c0_13, %c0_14] : memref<256x80xf32, #tpu.memory_space<vmem>>, vector<256x80xf32>
    tpu.vector_store %arg7[%c0_13, %c0_14], %21 {strides = array<i32>} : memref<256x80xf32, #tpu.memory_space<vmem>>, vector<256x80xf32>,
    %c256_i32 = arith.constant 256 : i32
    %23 = arith.muli %arg0, %c256_i32 : i32
    %24 = tpu.iota {dimensions = array<i32: 0>} : vector<256x1xi32>
    %25 = vector.broadcast %23 : i32 to vector<256x1xi32>
    %26 = arith.addi %25, %24 : vector<256x1xi32>
    %c1000_i32 = arith.constant 1000 : i32
    %27 = vector.broadcast %c1000_i32 : i32 to vector<256x1xi32>
    %28 = arith.cmpi slt, %26, %27 : vector<256x1xi32>
    %29 = arith.extui %28 : vector<256x1xi1> to vector<256x1xi32>
    %30 = arith.sitofp %29 : vector<256x1xi32> to vector<256x1xf32>
    %31 = arith.subf %20, %0 : vector<256x32xf32>
    %32 = arith.mulf %31, %31 : vector<256x32xf32>
    %cst_15 = arith.constant dense<0.000000e+00> : vector<256xf32>
    %33 = vector.multi_reduction <add>, %32, %cst_15 [1] : vector<256x32xf32> to vector<256xf32>
    %34 = vector.shape_cast %33 : vector<256xf32> to vector<256x1xf32>
    %35 = math.exp %9 : vector<256x16xf32>
    %cst_16 = arith.constant 1.000000e+00 : f32
    %36 = vector.broadcast %cst_16 : f32 to vector<256x16xf32>
    %37 = arith.addf %36, %9 : vector<256x16xf32>
    %38 = arith.mulf %8, %8 : vector<256x16xf32>
    %39 = arith.subf %37, %38 : vector<256x16xf32>
    %40 = arith.subf %39, %35 : vector<256x16xf32>
    %cst_17 = arith.constant dense<0.000000e+00> : vector<256xf32>
    %41 = vector.multi_reduction <add>, %40, %cst_17 [1] : vector<256x16xf32> to vector<256xf32>
    %42 = vector.shape_cast %41 : vector<256xf32> to vector<256x1xf32>
    %cst_18 = arith.constant -5.000000e-01 : f32
    %43 = vector.broadcast %cst_18 : f32 to vector<256x1xf32>
    %44 = arith.mulf %43, %42 : vector<256x1xf32>
    %45 = arith.mulf %20, %0 : vector<256x32xf32>
    %cst_19 = arith.constant dense<0.000000e+00> : vector<256xf32>
    %46 = vector.multi_reduction <add>, %45, %cst_19 [1] : vector<256x32xf32> to vector<256xf32>
    %47 = vector.shape_cast %46 : vector<256xf32> to vector<256x1xf32>
    %cst_20 = arith.constant 1.000000e+00 : f32
    %48 = vector.broadcast %cst_20 : f32 to vector<256x1xf32>
    %49 = arith.subf %48, %47 : vector<256x1xf32>
    %50 = arith.mulf %34, %30 : vector<256x1xf32>
    %51 = vector.shape_cast %50 : vector<256x1xf32> to vector<1x256x1xf32>
    %cst_21 = arith.constant dense<0.000000e+00> : vector<1xf32>
    %52 = vector.multi_reduction <add>, %51, %cst_21 [1, 2] : vector<1x256x1xf32> to vector<1xf32>
    %53 = vector.shape_cast %52 : vector<1xf32> to vector<1x1x1xf32>
    %54 = vector.extract %53[0, 0, 0] : f32 from vector<1x1x1xf32>
    %55 = arith.mulf %44, %30 : vector<256x1xf32>
    %56 = vector.shape_cast %55 : vector<256x1xf32> to vector<1x256x1xf32>
    %cst_22 = arith.constant dense<0.000000e+00> : vector<1xf32>
    %57 = vector.multi_reduction <add>, %56, %cst_22 [1, 2] : vector<1x256x1xf32> to vector<1xf32>
    %58 = vector.shape_cast %57 : vector<1xf32> to vector<1x1x1xf32>
    %59 = vector.extract %58[0, 0, 0] : f32 from vector<1x1x1xf32>
    %60 = arith.mulf %49, %30 : vector<256x1xf32>
    %61 = vector.shape_cast %60 : vector<256x1xf32> to vector<1x256x1xf32>
    %cst_23 = arith.constant dense<0.000000e+00> : vector<1xf32>
    %62 = vector.multi_reduction <add>, %61, %cst_23 [1, 2] : vector<1x256x1xf32> to vector<1xf32>
    %63 = vector.shape_cast %62 : vector<1xf32> to vector<1x1x1xf32>
    %64 = vector.extract %63[0, 0, 0] : f32 from vector<1x1x1xf32>
    %65 = tpu.iota {dimensions = array<i32: 0>} : vector<8x128xi32>
    %c0_i32 = arith.constant 0 : i32
    %66 = vector.broadcast %c0_i32 : i32 to vector<8x128xi32>
    %67 = arith.cmpi eq, %65, %66 : vector<8x128xi32>
    %c1_i32 = arith.constant 1 : i32
    %68 = vector.broadcast %c1_i32 : i32 to vector<8x128xi32>
    %69 = arith.cmpi eq, %65, %68 : vector<8x128xi32>
    %c2_i32 = arith.constant 2 : i32
    %70 = vector.broadcast %c2_i32 : i32 to vector<8x128xi32>
    %71 = arith.cmpi eq, %65, %70 : vector<8x128xi32>
    %cst_24 = arith.constant 0.000000e+00 : f32
    %72 = vector.broadcast %64 : f32 to vector<8x128xf32>
    %73 = vector.broadcast %cst_24 : f32 to vector<8x128xf32>
    %74 = arith.select %71, %72, %73 : vector<8x128xi1>, vector<8x128xf32>
    %75 = vector.broadcast %59 : f32 to vector<8x128xf32>
    %76 = arith.select %69, %75, %74 : vector<8x128xi1>, vector<8x128xf32>
    %77 = vector.broadcast %54 : f32 to vector<8x128xf32>
    %78 = arith.select %67, %77, %76 : vector<8x128xi1>, vector<8x128xf32>
    %c0_25 = arith.constant 0 : index
    %c0_26 = arith.constant 0 : index
    %c0_27 = arith.constant 0 : index
    %79 = vector.load %arg8[%c0_25, %c0_26, %c0_27] : memref<1x8x128xf32, #tpu.memory_space<vmem>>, vector<1x8x128xf32>
    %80 = vector.shape_cast %79 : vector<1x8x128xf32> to vector<8x128xf32>
    %81 = vector.shape_cast %78 : vector<8x128xf32> to vector<1x8x128xf32>
    tpu.vector_store %arg8[%c0_25, %c0_26, %c0_27], %81 {strides = array<i32>} : memref<1x8x128xf32, #tpu.memory_space<vmem>>, vector<1x8x128xf32>,
    return
  }
  func.func @transform_0(%arg0: i32) -> (i32, i32) {
    %c0_i32 = arith.constant 0 : i32
    %c0_i32_0 = arith.constant 0 : i32
    return %arg0, %c0_i32 : i32, i32
  }
  func.func @transform_1(%arg0: i32) -> (i32, i32) {
    %c0_i32 = arith.constant 0 : i32
    %c0_i32_0 = arith.constant 0 : i32
    return %arg0, %c0_i32 : i32, i32
  }
  func.func @transform_2(%arg0: i32) -> (i32, i32) {
    %c0_i32 = arith.constant 0 : i32
    %c0_i32_0 = arith.constant 0 : i32
    %c0_i32_1 = arith.constant 0 : i32
    return %c0_i32, %c0_i32_0 : i32, i32
  }
  func.func @transform_3(%arg0: i32) -> (i32, i32) {
    %c0_i32 = arith.constant 0 : i32
    %c0_i32_0 = arith.constant 0 : i32
    %c0_i32_1 = arith.constant 0 : i32
    return %c0_i32, %c0_i32_0 : i32, i32
  }
  func.func @transform_4(%arg0: i32) -> (i32, i32) {
    %c0_i32 = arith.constant 0 : i32
    %c0_i32_0 = arith.constant 0 : i32
    %c0_i32_1 = arith.constant 0 : i32
    return %c0_i32, %c0_i32_0 : i32, i32
  }
  func.func @transform_5(%arg0: i32) -> (i32, i32) {
    %c0_i32 = arith.constant 0 : i32
    %c0_i32_0 = arith.constant 0 : i32
    %c0_i32_1 = arith.constant 0 : i32
    return %c0_i32, %c0_i32_0 : i32, i32
  }
  func.func @transform_6(%arg0: i32) -> (i32, i32) {
    %c0_i32 = arith.constant 0 : i32
    %c0_i32_0 = arith.constant 0 : i32
    return %arg0, %c0_i32 : i32, i32
  }
  func.func @transform_7(%arg0: i32) -> (i32, i32, i32) {
    %c0_i32 = arith.constant 0 : i32
    %c0_i32_0 = arith.constant 0 : i32
    %c0_i32_1 = arith.constant 0 : i32
    return %arg0, %c0_i32, %c0_i32_0 : i32, i32, i32
  }
}

</mosaic_0001>

<llo_original>
// kernel: tpu_custom_call.1
$region0: #{tpu_custom_call.1}
  #allocation0 [shape = 'u32[]', space=smem, size = 0x4, offset = 0x4, fixed_abs, tag = 'smem constant byte address 0x4 - core index']
  #allocation1 [shape = 'u32[144,128]{1,0:T(1,128)}', space=vmem, size = 0x12000, scoped, tag = 'internal scratch']
  %s0 = inlined_call_operand.vmem [shape: f32[1024,32], index: 0, kind: input, shape index: {}]
  %s1 = inlined_call_operand.vmem [shape: f32[1024,16], index: 1, kind: input, shape index: {}]
  %s2 = inlined_call_operand.vmem [shape: bf16[32,32], index: 2, kind: input, shape index: {}]
  %s3 = inlined_call_operand.vmem [shape: f32[1,32], index: 3, kind: input, shape index: {}]
  %s4 = inlined_call_operand.vmem [shape: bf16[16,32], index: 4, kind: input, shape index: {}]
  %s5 = inlined_call_operand.vmem [shape: f32[1,32], index: 5, kind: input, shape index: {}]
  %s6 = inlined_call_operand.vmem [shape: f32[1024,80], index: 6, kind: output, shape index: {0}]
  %s7 = inlined_call_operand.hbm [shape: f32[4,8,128], index: 7, kind: output, shape index: {1}]
  %8 = xla_tuple %s6, %s7
  %s9 = sld [smem:[#allocation0]]
  $region65: #{tpu_custom_call.1} parent=0
    _
  %s11 = ssub.s32 1, %s9
  %s12 = scalar_select 0, %s11, %s9
  $region1: #{tpu_custom_call.1} parent=0
    #allocation2 [shape = 'u8[8192]{0}', space=vmem, size = 0x2000, scoped, tag = 'output window, operand 1']
    #allocation3 [shape = 's32[2]{0}', space=sflag, size = 0x8, scoped, tag = 'scoped memory for tpu_custom_call.1']
    %13 = vsyncpa [#allocation3], 0
    %s14 = scalar_lea.sflag [#allocation3], 1
    %15 = vsyncpa %s14, 0
    loop: start=0, step=1, limit=6
    $region2: #{tpu_custom_call.1} parent=1 // loop_pre_header
      _
    $region3: #{tpu_custom_call.1} parent=1 // loop_header
      %s17 = sphi 0, %s21
      %p18 = scmp.ge.s32.totalorder %s17, 6
      %s27 = sphi 0, %s29
      %s30 = sphi 0, %s27
      %s31 = sphi 0, %s30
      %s47 = sphi 0, %s31
      %s53 = sphi 0, %s55
      %s56 = sphi 0, %s53
      %s57 = sphi 0, %s56
      %s73 = sphi 0, %s57
      %s77 = sphi 0, %s77
      %s79 = sphi 0, %s77
      %s80 = sphi 0, %s79
      %s94 = sphi 0, %s80
      %s98 = sphi 0, %s98
      %s100 = sphi 0, %s98
      %s101 = sphi 0, %s100
      %s115 = sphi 0, %s101
      %s119 = sphi 0, %s119
      %s121 = sphi 0, %s119
      %s122 = sphi 0, %s121
      %s136 = sphi 0, %s122
      %s140 = sphi 0, %s140
      %s142 = sphi 0, %s140
      %s143 = sphi 0, %s142
      %s157 = sphi 0, %s143
      %s163 = sphi 0, %s165
      %s166 = sphi 0, %s163
      %s167 = sphi 0, %s166
      %s183 = sphi 0, %s167
      %s189 = sphi 0, %s191
      %s192 = sphi 0, %s189
      %s193 = sphi 0, %s192
      %s209 = sphi 0, %s193
    $region4: #{tpu_custom_call.1} parent=1 // loop_header_branch
      %20 = sbr.rel (%p18) target = $region8
    $region5: #{tpu_custom_call.1} parent=1 // loop_body
      %s22 = ssub.s32 %s17, 1
      %s23 = ssub.s32 %s17, 2
      %s24 = sadd.s32 %s17, 1
      %s25 = ssub.s32 %s17, %s24
      %p26 = scmp.eq.s32.totalorder %s25, 0
      %s28 = sadd.s32 %s27, 1
      %s29 = scalar_select %p26, %s27, %s28
      %p32 = pneg %p26
      %p33 = scmp.eq.s32.totalorder %s17, 3
      %p34 = por %p32, %p33
      %p35 = scmp.ne.s32.totalorder %s27, %s30
      %p36 = scmp.eq.s32.totalorder %s17, 0
      %p37 = por %p35, %p36
      %p38 = scmp.ne.s32.totalorder %s27, %s30
      %p39 = scmp.eq.s32.totalorder %s22, 3
      %p40 = por %p38, %p39
      %p41 = scmp.ne.s32.totalorder %s30, %s31
      %p42 = scmp.eq.s32.totalorder %s22, 0
      %p43 = por %p41, %p42
      %p44 = scmp.ne.s32.totalorder %s30, %s31
      %p45 = scmp.eq.s32.totalorder %s23, 3
      %p46 = por %p44, %p45
      %p48 = scmp.ne.s32.totalorder %s31, %s47
      %p49 = scmp.eq.s32.totalorder %s23, 0
      %p50 = por %p48, %p49
      %s51 = ssub.s32 %s17, %s24
      %p52 = scmp.eq.s32.totalorder %s51, 0
      %s54 = sadd.s32 %s53, 1
      %s55 = scalar_select %p52, %s53, %s54
      %p58 = pneg %p52
      %p59 = scmp.eq.s32.totalorder %s17, 3
      %p60 = por %p58, %p59
      %p61 = scmp.ne.s32.totalorder %s53, %s56
      %p62 = scmp.eq.s32.totalorder %s17, 0
      %p63 = por %p61, %p62
      %p64 = scmp.ne.s32.totalorder %s53, %s56
      %p65 = scmp.eq.s32.totalorder %s22, 3
      %p66 = por %p64, %p65
      %p67 = scmp.ne.s32.totalorder %s56, %s57
      %p68 = scmp.eq.s32.totalorder %s22, 0
      %p69 = por %p67, %p68
      %p70 = scmp.ne.s32.totalorder %s56, %s57
      %p71 = scmp.eq.s32.totalorder %s23, 3
      %p72 = por %p70, %p71
      %p74 = scmp.ne.s32.totalorder %s57, %s73
      %p75 = scmp.eq.s32.totalorder %s23, 0
      %p76 = por %p74, %p75
      %s78 = sadd.s32 %s77, 1
      %p81 = scmp.eq.s32.totalorder %s17, 3
      %p82 = scmp.ne.s32.totalorder %s77, %s79
      %p83 = scmp.eq.s32.totalorder %s17, 0
      %p84 = por %p82, %p83
      %p85 = scmp.ne.s32.totalorder %s77, %s79
      %p86 = scmp.eq.s32.totalorder %s22, 3
      %p87 = por %p85, %p86
      %p88 = scmp.ne.s32.totalorder %s79, %s80
      %p89 = scmp.eq.s32.totalorder %s22, 0
      %p90 = por %p88, %p89
      %p91 = scmp.ne.s32.totalorder %s79, %s80
      %p92 = scmp.eq.s32.totalorder %s23, 3
      %p93 = por %p91, %p92
      %p95 = scmp.ne.s32.totalorder %s80, %s94
      %p96 = scmp.eq.s32.totalorder %s23, 0
      %p97 = por %p95, %p96
      %s99 = sadd.s32 %s98, 1
      %p102 = scmp.eq.s32.totalorder %s17, 3
      %p103 = scmp.ne.s32.totalorder %s98, %s100
      %p104 = scmp.eq.s32.totalorder %s17, 0
      %p105 = por %p103, %p104
      %p106 = scmp.ne.s32.totalorder %s98, %s100
      %p107 = scmp.eq.s32.totalorder %s22, 3
      %p108 = por %p106, %p107
      %p109 = scmp.ne.s32.totalorder %s100, %s101
      %p110 = scmp.eq.s32.totalorder %s22, 0
      %p111 = por %p109, %p110
      %p112 = scmp.ne.s32.totalorder %s100, %s101
      %p113 = scmp.eq.s32.totalorder %s23, 3
      %p114 = por %p112, %p113
      %p116 = scmp.ne.s32.totalorder %s101, %s115
      %p117 = scmp.eq.s32.totalorder %s23, 0
      %p118 = por %p116, %p117
      %s120 = sadd.s32 %s119, 1
      %p123 = scmp.eq.s32.totalorder %s17, 3
      %p124 = scmp.ne.s32.totalorder %s119, %s121
      %p125 = scmp.eq.s32.totalorder %s17, 0
      %p126 = por %p124, %p125
      %p127 = scmp.ne.s32.totalorder %s119, %s121
      %p128 = scmp.eq.s32.totalorder %s22, 3
      %p129 = por %p127, %p128
      %p130 = scmp.ne.s32.totalorder %s121, %s122
      %p131 = scmp.eq.s32.totalorder %s22, 0
      %p132 = por %p130, %p131
      %p133 = scmp.ne.s32.totalorder %s121, %s122
      %p134 = scmp.eq.s32.totalorder %s23, 3
      %p135 = por %p133, %p134
      %p137 = scmp.ne.s32.totalorder %s122, %s136
      %p138 = scmp.eq.s32.totalorder %s23, 0
      %p139 = por %p137, %p138
      %s141 = sadd.s32 %s140, 1
      %p144 = scmp.eq.s32.totalorder %s17, 3
      %p145 = scmp.ne.s32.totalorder %s140, %s142
      %p146 = scmp.eq.s32.totalorder %s17, 0
      %p147 = por %p145, %p146
      %p148 = scmp.ne.s32.totalorder %s140, %s142
      %p149 = scmp.eq.s32.totalorder %s22, 3
      %p150 = por %p148, %p149
      %p151 = scmp.ne.s32.totalorder %s142, %s143
      %p152 = scmp.eq.s32.totalorder %s22, 0
      %p153 = por %p151, %p152
      %p154 = scmp.ne.s32.totalorder %s142, %s143
      %p155 = scmp.eq.s32.totalorder %s23, 3
      %p156 = por %p154, %p155
      %p158 = scmp.ne.s32.totalorder %s143, %s157
      %p159 = scmp.eq.s32.totalorder %s23, 0
      %p160 = por %p158, %p159
      %s161 = ssub.s32 %s17, %s24
      %p162 = scmp.eq.s32.totalorder %s161, 0
      %s164 = sadd.s32 %s163, 1
      %s165 = scalar_select %p162, %s163, %s164
      %p168 = pneg %p162
      %p169 = scmp.eq.s32.totalorder %s17, 3
      %p170 = por %p168, %p169
      %p171 = scmp.ne.s32.totalorder %s163, %s166
      %p172 = scmp.eq.s32.totalorder %s17, 0
      %p173 = por %p171, %p172
      %p174 = scmp.ne.s32.totalorder %s163, %s166
      %p175 = scmp.eq.s32.totalorder %s22, 3
      %p176 = por %p174, %p175
      %p177 = scmp.ne.s32.totalorder %s166, %s167
      %p178 = scmp.eq.s32.totalorder %s22, 0
      %p179 = por %p177, %p178
      %p180 = scmp.ne.s32.totalorder %s166, %s167
      %p181 = scmp.eq.s32.totalorder %s23, 3
      %p182 = por %p180, %p181
      %p184 = scmp.ne.s32.totalorder %s167, %s183
      %p185 = scmp.eq.s32.totalorder %s23, 0
      %p186 = por %p184, %p185
      %s187 = ssub.s32 %s17, %s24
      %p188 = scmp.eq.s32.totalorder %s187, 0
      %s190 = sadd.s32 %s189, 1
      %s191 = scalar_select %p188, %s189, %s190
      %p194 = pneg %p188
      %p195 = scmp.eq.s32.totalorder %s17, 3
      %p196 = por %p194, %p195
      %p197 = scmp.ne.s32.totalorder %s189, %s192
      %p198 = scmp.eq.s32.totalorder %s17, 0
      %p199 = por %p197, %p198
      %p200 = scmp.ne.s32.totalorder %s189, %s192
      %p201 = scmp.eq.s32.totalorder %s22, 3
      %p202 = por %p200, %p201
      %p203 = scmp.ne.s32.totalorder %s192, %s193
      %p204 = scmp.eq.s32.totalorder %s22, 0
      %p205 = por %p203, %p204
      %p206 = scmp.ne.s32.totalorder %s192, %s193
      %p207 = scmp.eq.s32.totalorder %s23, 3
      %p208 = por %p206, %p207
      %p210 = scmp.ne.s32.totalorder %s193, %s209
      %p211 = scmp.eq.s32.totalorder %s23, 0
      %p212 = por %p210, %p211
      %p213 = scmp.le.s32.totalorder 1, %s17
      %p214 = scmp.lt.s32.totalorder %s17, 5
      %p215 = pnand %p213, %p214
      %p216 = pneg %p215
      // Predicated region
      $region9: #{tpu_custom_call.1} parent=5 // pred_check
        _
      $region10: #{tpu_custom_call.1} parent=5 // pred_check_branch
        %218 = sbr.rel (%p215) target = $region12
      $region11: #{tpu_custom_call.1} parent=5 // pred_region
        %s219 = ssub.s32 %s17, 1
        // Predicated region
        $region13: #{tpu_custom_call.1} parent=11 // pred_check
          %p220 = pneg %p90
        $region14: #{tpu_custom_call.1} parent=11 // pred_check_branch
          %222 = sbr.rel (%p220) target = $region16
        $region15: #{tpu_custom_call.1} parent=11 // pred_region
          _
        $region16: #{tpu_custom_call.1} parent=11 // pred_fallthru
          _
        // Predicated region
        $region17: #{tpu_custom_call.1} parent=11 // pred_check
          %p223 = pneg %p111
        $region18: #{tpu_custom_call.1} parent=11 // pred_check_branch
          %225 = sbr.rel (%p223) target = $region20
        $region19: #{tpu_custom_call.1} parent=11 // pred_region
          _
        $region20: #{tpu_custom_call.1} parent=11 // pred_fallthru
          _
        // Predicated region
        $region21: #{tpu_custom_call.1} parent=11 // pred_check
          %p226 = pneg %p132
        $region22: #{tpu_custom_call.1} parent=11 // pred_check_branch
          %228 = sbr.rel (%p226) target = $region24
        $region23: #{tpu_custom_call.1} parent=11 // pred_region
          _
        $region24: #{tpu_custom_call.1} parent=11 // pred_fallthru
          _
        // Predicated region
        $region25: #{tpu_custom_call.1} parent=11 // pred_check
          %p229 = pneg %p153
        $region26: #{tpu_custom_call.1} parent=11 // pred_check_branch
          %231 = sbr.rel (%p229) target = $region28
        $region27: #{tpu_custom_call.1} parent=11 // pred_region
          _
        $region28: #{tpu_custom_call.1} parent=11 // pred_fallthru
          _
      $region12: #{tpu_custom_call.1} parent=5 // pred_fallthru
        _
      %p232 = scmp.lt.s32.totalorder %s17, 4
      // Predicated region
      $region29: #{tpu_custom_call.1} parent=5 // pred_check
        %p233 = pneg %p232
      $region30: #{tpu_custom_call.1} parent=5 // pred_check_branch
        %235 = sbr.rel (%p233) target = $region32
      $region31: #{tpu_custom_call.1} parent=5 // pred_region
        // Predicated region
        $region33: #{tpu_custom_call.1} parent=31 // pred_check
          %p236 = pneg %p37
        $region34: #{tpu_custom_call.1} parent=31 // pred_check_branch
          %238 = sbr.rel (%p236) target = $region36
        $region35: #{tpu_custom_call.1} parent=31 // pred_region
          %s239 = smul.u32 32, %s17
          %p240 = scmp.lt.s32.totalorder %s239, 127
          %s241 = scalar_select %p240, %s239, 127
          %s242 = smul.addr %s241, 8
          %s243 = scalar_lea.vmem %s0, %s242
          %s244 = smul.u32 32, %s17
        $region36: #{tpu_custom_call.1} parent=31 // pred_fallthru
          _
        // Predicated region
        $region37: #{tpu_custom_call.1} parent=31 // pred_check
          %p245 = pneg %p63
        $region38: #{tpu_custom_call.1} parent=31 // pred_check_branch
          %247 = sbr.rel (%p245) target = $region40
        $region39: #{tpu_custom_call.1} parent=31 // pred_region
          %s248 = smul.u32 32, %s17
          %p249 = scmp.lt.s32.totalorder %s248, 127
          %s250 = scalar_select %p249, %s248, 127
          %s251 = smul.addr %s250, 8
          %s252 = scalar_lea.vmem %s1, %s251
          %s253 = smul.u32 32, %s17
        $region40: #{tpu_custom_call.1} parent=31 // pred_fallthru
          _
      $region32: #{tpu_custom_call.1} parent=5 // pred_fallthru
        _
      %p254 = scmp.le.s32.totalorder 1, %s17
      %p255 = scmp.lt.s32.totalorder %s17, 5
      %p256 = pnand %p254, %p255
      %p257 = pneg %p256
      // Predicated region
      $region41: #{tpu_custom_call.1} parent=5 // pred_check
        _
      $region42: #{tpu_custom_call.1} parent=5 // pred_check_branch
        %259 = sbr.rel (%p256) target = $region44
      $region43: #{tpu_custom_call.1} parent=5 // pred_region
        %s260 = ssub.s32 %s17, 1
        %s261 = smul.u32 32, %s22
        %p262 = scmp.lt.s32.totalorder %s261, 127
        %s263 = scalar_select %p262, %s261, 127
        %s264 = smul.addr %s263, 8
        %s265 = scalar_lea.vmem %s0, %s264
        %p266 = pneg %p43
        %p267 = pneg %p40
        %s268 = smul.u32 32, %s22
        %p269 = scmp.lt.s32.totalorder %s268, 127
        %s270 = scalar_select %p269, %s268, 127
        %s271 = smul.addr %s270, 8
        %s272 = scalar_lea.vmem %s1, %s271
        %p273 = pneg %p69
        %p274 = pneg %p66
        %p275 = pneg %p90
        %p276 = pneg %p87
        %p277 = pneg %p111
        %p278 = pneg %p108
        %p279 = pneg %p132
        %p280 = pneg %p129
        %p281 = pneg %p153
        %p282 = pneg %p150
        %p283 = pneg %p179
        %p284 = pneg %p176
        %s285 = smul.u32 32, %s22
        %p286 = scmp.lt.s32.totalorder %s285, 127
        %s287 = scalar_select %p286, %s285, 127
        %s288 = smul.addr %s287, 8
        %s289 = scalar_lea.vmem %s6, %s288
        %p290 = pneg %p205
        %p291 = pneg %p202
        %s292 = sand.u32 %s192, 1
        %s293 = scalar_lea.sflag [#allocation3], %s292
        %s294 = sand.u32 %s192, 1
        %s295 = smul.addr %s294, 8
        %s296 = scalar_lea.vmem [#allocation2], %s295
        %s297 = smul.u32 32, %s22
        %p298 = scmp.lt.s32.totalorder %s297, 127
        %s299 = scalar_select %p298, %s297, 127
        %s300 = smul.addr %s299, 8
        %s301 = scalar_lea.vmem %s0, %s300
        %s302 = smul.u32 32, %s22
        %s303 = smul.u32 32, %s22
        %p304 = scmp.lt.s32.totalorder %s303, 127
        %s305 = scalar_select %p304, %s303, 127
        %s306 = smul.addr %s305, 8
        %s307 = scalar_lea.vmem %s1, %s306
        %s308 = smul.u32 32, %s22
        %s309 = smul.u32 32, %s22
        %p310 = scmp.lt.s32.totalorder %s309, 127
        %s311 = scalar_select %p310, %s309, 127
        %s312 = smul.addr %s311, 8
        %s313 = scalar_lea.vmem %s6, %s312
        %s314 = smul.u32 32, %s22
        %v316 = vld [vmem:[%s301] sm:$0xff]
        %v317 = vld [vmem:[%s301 + $0x8] sm:$0xff]
        %v318 = vld [vmem:[%s301 + $0x10] sm:$0xff]
        %v319 = vld [vmem:[%s301 + $0x18] sm:$0xff]
        %v320 = vld [vmem:[%s301 + $0x20] sm:$0xff]
        %v321 = vld [vmem:[%s301 + $0x28] sm:$0xff]
        %v322 = vld [vmem:[%s301 + $0x30] sm:$0xff]
        %v323 = vld [vmem:[%s301 + $0x38] sm:$0xff]
        %v324 = vld [vmem:[%s301 + $0x40] sm:$0xff]
        %v325 = vld [vmem:[%s301 + $0x48] sm:$0xff]
        %v326 = vld [vmem:[%s301 + $0x50] sm:$0xff]
        %v327 = vld [vmem:[%s301 + $0x58] sm:$0xff]
        %v328 = vld [vmem:[%s301 + $0x60] sm:$0xff]
        %v329 = vld [vmem:[%s301 + $0x68] sm:$0xff]
        %v330 = vld [vmem:[%s301 + $0x70] sm:$0xff]
        %v331 = vld [vmem:[%s301 + $0x78] sm:$0xff]
        %v332 = vld [vmem:[%s301 + $0x80] sm:$0xff]
        %v333 = vld [vmem:[%s301 + $0x88] sm:$0xff]
        %v334 = vld [vmem:[%s301 + $0x90] sm:$0xff]
        %v335 = vld [vmem:[%s301 + $0x98] sm:$0xff]
        %v336 = vld [vmem:[%s301 + $0xa0] sm:$0xff]
        %v337 = vld [vmem:[%s301 + $0xa8] sm:$0xff]
        %v338 = vld [vmem:[%s301 + $0xb0] sm:$0xff]
        %v339 = vld [vmem:[%s301 + $0xb8] sm:$0xff]
        %v340 = vld [vmem:[%s301 + $0xc0] sm:$0xff]
        %v341 = vld [vmem:[%s301 + $0xc8] sm:$0xff]
        %v342 = vld [vmem:[%s301 + $0xd0] sm:$0xff]
        %v343 = vld [vmem:[%s301 + $0xd8] sm:$0xff]
        %v344 = vld [vmem:[%s301 + $0xe0] sm:$0xff]
        %v345 = vld [vmem:[%s301 + $0xe8] sm:$0xff]
        %v346 = vld [vmem:[%s301 + $0xf0] sm:$0xff]
        %v347 = vld [vmem:[%s301 + $0xf8] sm:$0xff]
        %v348 = vld [vmem:[%s307] sm:$0xff]
        %v349 = vld [vmem:[%s307 + $0x8] sm:$0xff]
        %v350 = vld [vmem:[%s307 + $0x10] sm:$0xff]
        %v351 = vld [vmem:[%s307 + $0x18] sm:$0xff]
        %v352 = vld [vmem:[%s307 + $0x20] sm:$0xff]
        %v353 = vld [vmem:[%s307 + $0x28] sm:$0xff]
        %v354 = vld [vmem:[%s307 + $0x30] sm:$0xff]
        %v355 = vld [vmem:[%s307 + $0x38] sm:$0xff]
        %v356 = vld [vmem:[%s307 + $0x40] sm:$0xff]
        %v357 = vld [vmem:[%s307 + $0x48] sm:$0xff]
        %v358 = vld [vmem:[%s307 + $0x50] sm:$0xff]
        %v359 = vld [vmem:[%s307 + $0x58] sm:$0xff]
        %v360 = vld [vmem:[%s307 + $0x60] sm:$0xff]
        %v361 = vld [vmem:[%s307 + $0x68] sm:$0xff]
        %v362 = vld [vmem:[%s307 + $0x70] sm:$0xff]
        %v363 = vld [vmem:[%s307 + $0x78] sm:$0xff]
        %v364 = vld [vmem:[%s307 + $0x80] sm:$0xff]
        %v365 = vld [vmem:[%s307 + $0x88] sm:$0xff]
        %v366 = vld [vmem:[%s307 + $0x90] sm:$0xff]
        %v367 = vld [vmem:[%s307 + $0x98] sm:$0xff]
        %v368 = vld [vmem:[%s307 + $0xa0] sm:$0xff]
        %v369 = vld [vmem:[%s307 + $0xa8] sm:$0xff]
        %v370 = vld [vmem:[%s307 + $0xb0] sm:$0xff]
        %v371 = vld [vmem:[%s307 + $0xb8] sm:$0xff]
        %v372 = vld [vmem:[%s307 + $0xc0] sm:$0xff]
        %v373 = vld [vmem:[%s307 + $0xc8] sm:$0xff]
        %v374 = vld [vmem:[%s307 + $0xd0] sm:$0xff]
        %v375 = vld [vmem:[%s307 + $0xd8] sm:$0xff]
        %v376 = vld [vmem:[%s307 + $0xe0] sm:$0xff]
        %v377 = vld [vmem:[%s307 + $0xe8] sm:$0xff]
        %v378 = vld [vmem:[%s307 + $0xf0] sm:$0xff]
        %v379 = vld [vmem:[%s307 + $0xf8] sm:$0xff]
        %v380 = vpack.c.bf16 %v317, %v316
        %v381 = vpack.c.bf16 %v319, %v318
        %v382 = vpack.c.bf16 %v321, %v320
        %v383 = vpack.c.bf16 %v323, %v322
        %v384 = vpack.c.bf16 %v325, %v324
        %v385 = vpack.c.bf16 %v327, %v326
        %v386 = vpack.c.bf16 %v329, %v328
        %v387 = vpack.c.bf16 %v331, %v330
        %v388 = vpack.c.bf16 %v333, %v332
        %v389 = vpack.c.bf16 %v335, %v334
        %v390 = vpack.c.bf16 %v337, %v336
        %v391 = vpack.c.bf16 %v339, %v338
        %v392 = vpack.c.bf16 %v341, %v340
        %v393 = vpack.c.bf16 %v343, %v342
        %v394 = vpack.c.bf16 %v345, %v344
        %v395 = vpack.c.bf16 %v347, %v346
        %v396 = vld [vmem:[%s2] sm:$0xf]
        %v397 = vld [vmem:[%s2 + $0x4] sm:$0xf]
        %v398 = vld [vmem:[%s2 + $0x8] sm:$0xf]
        %v399 = vld [vmem:[%s2 + $0xc] sm:$0xf]
        %v400 = vld [vmem:[%s3] sm:$0x1]
        %v402 = vlaneseq
        %v403 = vshrl.u32 %v402, 7
        %v404 = vsub.s32 0, %v403
        %v405 = vrot.slane %v400, %v404
        %v411 = vunpack.c.l.b16 %v396
        %v412 = vunpack.c.l.b16 %v397
        %v413 = vunpack.c.l.b16 %v398
        %v414 = vunpack.c.l.b16 %v399
        %v415 = vpack.c.b16 %v412, %v411
        %v416 = vpack.c.b16 %v414, %v413
        %vm419 = vcmask 261120
        %v421 = vsel %vm419, %v380, 0
        %v424 = vsel %vm419, %v381, 0
        %v427 = vsel %vm419, %v382, 0
        %v430 = vsel %vm419, %v383, 0
        %v433 = vsel %vm419, %v384, 0
        %v436 = vsel %vm419, %v385, 0
        %v439 = vsel %vm419, %v386, 0
        %v442 = vsel %vm419, %v387, 0
        %v445 = vsel %vm419, %v388, 0
        %v448 = vsel %vm419, %v389, 0
        %v451 = vsel %vm419, %v390, 0
        %v454 = vsel %vm419, %v391, 0
        %v457 = vsel %vm419, %v392, 0
        %v460 = vsel %vm419, %v393, 0
        %v463 = vsel %vm419, %v394, 0
        %v466 = vsel %vm419, %v395, 0
        %468 = vmatprep.subr.bf16.mxu0 0
        %469 = vmatpush1.bf16.msra.mxu0 0
        %470 = vmatprep.subr.bf16.mxu0 0
        %471 = vmatpush1.bf16.msra.mxu0 0
        %472 = vmatprep.subr.bf16.mxu0 0
        %473 = vmatpush1.bf16.msra.mxu0 0
        %474 = vmatprep.subr.bf16.mxu0 0
        %475 = vmatpush1.bf16.msra.mxu0 0
        %476 = vmatprep.subr.bf16.mxu0 0
        %477 = vmatpush1.bf16.msra.mxu0 0
        %478 = vmatprep.subr.bf16.mxu0 0
        %479 = vmatpush1.bf16.msra.mxu0 0
        %480 = vmatprep.subr.bf16.mxu0 0
        %481 = vmatpush1.bf16.msra.mxu0 %v416
        %482 = vmatprep.subr.bf16.mxu0 0
        %483 = vmatpush1.bf16.msra.mxu0 %v415
        %484 = vmatprep.subr.bf16.mxu0 0
        %485 = vmatpush2.bf16.msra.mxu0 0
        %486 = vmatprep.subr.bf16.mxu0 0
        %487 = vmatpush2.bf16.msra.mxu0 0
        %488 = vmatprep.subr.bf16.mxu0 0
        %489 = vmatpush2.bf16.msra.mxu0 0
        %490 = vmatprep.subr.bf16.mxu0 0
        %491 = vmatpush2.bf16.msra.mxu0 0
        %492 = vmatprep.subr.bf16.mxu0 0
        %493 = vmatpush2.bf16.msra.mxu0 0
        %494 = vmatprep.subr.bf16.mxu0 0
        %495 = vmatpush2.bf16.msra.mxu0 0
        %496 = vmatprep.subr.bf16.mxu0 0
        %497 = vmatpush2.bf16.msra.mxu0 0
        %498 = vmatprep.subr.bf16.mxu0 0
        %499 = vmatpush2.bf16.msra.mxu0 0
        %500 = vmatprep.mubr.bf16.mxu0 0
        %501 = vmatmul.mubr.bf16.gmra.mxu0 %v421
        %v502 = vpop.f32.mrf.mxu0
        %v503 = vadd.f32 %v405, %v502
        %v504 = vpop.f32.mrf.mxu0
        %v505 = vpop.f32.mrf.mxu0
        %v506 = vadd.f32 %v405, %v505
        %v507 = vpop.f32.mrf.mxu0
        %508 = vmatprep.mubr.bf16.mxu0 0
        %509 = vmatmul.mubr.bf16.gmra.mxu0 %v424
        %v510 = vpop.f32.mrf.mxu0
        %v511 = vadd.f32 %v405, %v510
        %v512 = vpop.f32.mrf.mxu0
        %v513 = vpop.f32.mrf.mxu0
        %v514 = vadd.f32 %v405, %v513
        %v515 = vpop.f32.mrf.mxu0
        %516 = vmatprep.mubr.bf16.mxu0 0
        %517 = vmatmul.mubr.bf16.gmra.mxu0 %v427
        %v518 = vpop.f32.mrf.mxu0
        %v519 = vadd.f32 %v405, %v518
        %v520 = vpop.f32.mrf.mxu0
        %v521 = vpop.f32.mrf.mxu0
        %v522 = vadd.f32 %v405, %v521
        %v523 = vpop.f32.mrf.mxu0
        %524 = vmatprep.mubr.bf16.mxu0 0
        %525 = vmatmul.mubr.bf16.gmra.mxu0 %v430
        %v526 = vpop.f32.mrf.mxu0
        %v527 = vadd.f32 %v405, %v526
        %v528 = vpop.f32.mrf.mxu0
        %v529 = vpop.f32.mrf.mxu0
        %v530 = vadd.f32 %v405, %v529
        %v531 = vpop.f32.mrf.mxu0
        %532 = vmatprep.mubr.bf16.mxu0 0
        %533 = vmatmul.mubr.bf16.gmra.mxu0 %v433
        %v534 = vpop.f32.mrf.mxu0
        %v535 = vadd.f32 %v405, %v534
        %v536 = vpop.f32.mrf.mxu0
        %v537 = vpop.f32.mrf.mxu0
        %v538 = vadd.f32 %v405, %v537
        %v539 = vpop.f32.mrf.mxu0
        %540 = vmatprep.mubr.bf16.mxu0 0
        %541 = vmatmul.mubr.bf16.gmra.mxu0 %v436
        %v542 = vpop.f32.mrf.mxu0
        %v543 = vadd.f32 %v405, %v542
        %v544 = vpop.f32.mrf.mxu0
        %v545 = vpop.f32.mrf.mxu0
        %v546 = vadd.f32 %v405, %v545
        %v547 = vpop.f32.mrf.mxu0
        %548 = vmatprep.mubr.bf16.mxu0 0
        %549 = vmatmul.mubr.bf16.gmra.mxu0 %v439
        %v550 = vpop.f32.mrf.mxu0
        %v551 = vadd.f32 %v405, %v550
        %v552 = vpop.f32.mrf.mxu0
        %v553 = vpop.f32.mrf.mxu0
        %v554 = vadd.f32 %v405, %v553
        %v555 = vpop.f32.mrf.mxu0
        %556 = vmatprep.mubr.bf16.mxu0 0
        %557 = vmatmul.mubr.bf16.gmra.mxu0 %v442
        %v558 = vpop.f32.mrf.mxu0
        %v559 = vadd.f32 %v405, %v558
        %v560 = vpop.f32.mrf.mxu0
        %v561 = vpop.f32.mrf.mxu0
        %v562 = vadd.f32 %v405, %v561
        %v563 = vpop.f32.mrf.mxu0
        %564 = vmatprep.mubr.bf16.mxu0 0
        %565 = vmatmul.mubr.bf16.gmra.mxu0 %v445
        %v566 = vpop.f32.mrf.mxu0
        %v567 = vadd.f32 %v405, %v566
        %v568 = vpop.f32.mrf.mxu0
        %v569 = vpop.f32.mrf.mxu0
        %v570 = vadd.f32 %v405, %v569
        %v571 = vpop.f32.mrf.mxu0
        %572 = vmatprep.mubr.bf16.mxu0 0
        %573 = vmatmul.mubr.bf16.gmra.mxu0 %v448
        %v574 = vpop.f32.mrf.mxu0
        %v575 = vadd.f32 %v405, %v574
        %v576 = vpop.f32.mrf.mxu0
        %v577 = vpop.f32.mrf.mxu0
        %v578 = vadd.f32 %v405, %v577
        %v579 = vpop.f32.mrf.mxu0
        %580 = vmatprep.mubr.bf16.mxu0 0
        %581 = vmatmul.mubr.bf16.gmra.mxu0 %v451
        %v582 = vpop.f32.mrf.mxu0
        %v583 = vadd.f32 %v405, %v582
        %v584 = vpop.f32.mrf.mxu0
        %v585 = vpop.f32.mrf.mxu0
        %v586 = vadd.f32 %v405, %v585
        %v587 = vpop.f32.mrf.mxu0
        %588 = vmatprep.mubr.bf16.mxu0 0
        %589 = vmatmul.mubr.bf16.gmra.mxu0 %v454
        %v590 = vpop.f32.mrf.mxu0
        %v591 = vadd.f32 %v405, %v590
        %v592 = vpop.f32.mrf.mxu0
        %v593 = vpop.f32.mrf.mxu0
        %v594 = vadd.f32 %v405, %v593
        %v595 = vpop.f32.mrf.mxu0
        %596 = vmatprep.mubr.bf16.mxu0 0
        %597 = vmatmul.mubr.bf16.gmra.mxu0 %v457
        %v598 = vpop.f32.mrf.mxu0
        %v599 = vadd.f32 %v405, %v598
        %v600 = vpop.f32.mrf.mxu0
        %v601 = vpop.f32.mrf.mxu0
        %v602 = vadd.f32 %v405, %v601
        %v603 = vpop.f32.mrf.mxu0
        %604 = vmatprep.mubr.bf16.mxu0 0
        %605 = vmatmul.mubr.bf16.gmra.mxu0 %v460
        %v606 = vpop.f32.mrf.mxu0
        %v607 = vadd.f32 %v405, %v606
        %v608 = vpop.f32.mrf.mxu0
        %v609 = vpop.f32.mrf.mxu0
        %v610 = vadd.f32 %v405, %v609
        %v611 = vpop.f32.mrf.mxu0
        %612 = vmatprep.mubr.bf16.mxu0 0
        %613 = vmatmul.mubr.bf16.gmra.mxu0 %v463
        %v614 = vpop.f32.mrf.mxu0
        %v615 = vadd.f32 %v405, %v614
        %v616 = vpop.f32.mrf.mxu0
        %v617 = vpop.f32.mrf.mxu0
        %v618 = vadd.f32 %v405, %v617
        %v619 = vpop.f32.mrf.mxu0
        %620 = vmatprep.mubr.bf16.mxu0 0
        %621 = vmatmul.mubr.bf16.gmra.mxu0 %v466
        %v622 = vpop.f32.mrf.mxu0
        %v623 = vadd.f32 %v405, %v622
        %v624 = vpop.f32.mrf.mxu0
        %v625 = vpop.f32.mrf.mxu0
        %v626 = vadd.f32 %v405, %v625
        %v627 = vpop.f32.mrf.mxu0
        %628 = vdwg.mxu0
        %v629 = vmul.f32 %v503, 0.5
        %v630 = vmul.f32 %v506, 0.5
        %v631 = vmul.f32 %v511, 0.5
        %v632 = vmul.f32 %v514, 0.5
        %v633 = vmul.f32 %v519, 0.5
        %v634 = vmul.f32 %v522, 0.5
        %v635 = vmul.f32 %v527, 0.5
        %v636 = vmul.f32 %v530, 0.5
        %v637 = vmul.f32 %v535, 0.5
        %v638 = vmul.f32 %v538, 0.5
        %v639 = vmul.f32 %v543, 0.5
        %v640 = vmul.f32 %v546, 0.5
        %v641 = vmul.f32 %v551, 0.5
        %v642 = vmul.f32 %v554, 0.5
        %v643 = vmul.f32 %v559, 0.5
        %v644 = vmul.f32 %v562, 0.5
        %v645 = vmul.f32 %v567, 0.5
        %v646 = vmul.f32 %v570, 0.5
        %v647 = vmul.f32 %v575, 0.5
        %v648 = vmul.f32 %v578, 0.5
        %v649 = vmul.f32 %v583, 0.5
        %v650 = vmul.f32 %v586, 0.5
        %v651 = vmul.f32 %v591, 0.5
        %v652 = vmul.f32 %v594, 0.5
        %v653 = vmul.f32 %v599, 0.5
        %v654 = vmul.f32 %v602, 0.5
        %v655 = vmul.f32 %v607, 0.5
        %v656 = vmul.f32 %v610, 0.5
        %v657 = vmul.f32 %v615, 0.5
        %v658 = vmul.f32 %v618, 0.5
        %v659 = vmul.f32 %v623, 0.5
        %v660 = vmul.f32 %v626, 0.5
        %v661 = vmul.f32 %v629, 1.442695
        %v662 = vpow.pop %v661
        %v663 = vmul.f32 %v630, 1.442695
        %v664 = vpow.pop %v663
        %v665 = vmul.f32 %v631, 1.442695
        %v666 = vpow.pop %v665
        %v667 = vmul.f32 %v632, 1.442695
        %v668 = vpow.pop %v667
        %v669 = vmul.f32 %v633, 1.442695
        %v670 = vpow.pop %v669
        %v671 = vmul.f32 %v634, 1.442695
        %v672 = vpow.pop %v671
        %v673 = vmul.f32 %v635, 1.442695
        %v674 = vpow.pop %v673
        %v675 = vmul.f32 %v636, 1.442695
        %v676 = vpow.pop %v675
        %v677 = vmul.f32 %v637, 1.442695
        %v678 = vpow.pop %v677
        %v679 = vmul.f32 %v638, 1.442695
        %v680 = vpow.pop %v679
        %v681 = vmul.f32 %v639, 1.442695
        %v682 = vpow.pop %v681
        %v683 = vmul.f32 %v640, 1.442695
        %v684 = vpow.pop %v683
        %v685 = vmul.f32 %v641, 1.442695
        %v686 = vpow.pop %v685
        %v687 = vmul.f32 %v642, 1.442695
        %v688 = vpow.pop %v687
        %v689 = vmul.f32 %v643, 1.442695
        %v690 = vpow.pop %v689
        %v691 = vmul.f32 %v644, 1.442695
        %v692 = vpow.pop %v691
        %v693 = vmul.f32 %v645, 1.442695
        %v694 = vpow.pop %v693
        %v695 = vmul.f32 %v646, 1.442695
        %v696 = vpow.pop %v695
        %v697 = vmul.f32 %v647, 1.442695
        %v698 = vpow.pop %v697
        %v699 = vmul.f32 %v648, 1.442695
        %v700 = vpow.pop %v699
        %v701 = vmul.f32 %v649, 1.442695
        %v702 = vpow.pop %v701
        %v703 = vmul.f32 %v650, 1.442695
        %v704 = vpow.pop %v703
        %v705 = vmul.f32 %v651, 1.442695
        %v706 = vpow.pop %v705
        %v707 = vmul.f32 %v652, 1.442695
        %v708 = vpow.pop %v707
        %v709 = vmul.f32 %v653, 1.442695
        %v710 = vpow.pop %v709
        %v711 = vmul.f32 %v654, 1.442695
        %v712 = vpow.pop %v711
        %v713 = vmul.f32 %v655, 1.442695
        %v714 = vpow.pop %v713
        %v715 = vmul.f32 %v656, 1.442695
        %v716 = vpow.pop %v715
        %v717 = vmul.f32 %v657, 1.442695
        %v718 = vpow.pop %v717
        %v719 = vmul.f32 %v658, 1.442695
        %v720 = vpow.pop %v719
        %v721 = vmul.f32 %v659, 1.442695
        %v722 = vpow.pop %v721
        %v723 = vmul.f32 %v660, 1.442695
        %v724 = vpow.pop %v723
        %757 = vrot.lane.b32.xlu0 %v662, 112
        %v758 = vpop.permute.xlu0 %757
        %759 = vrot.lane.b32.xlu0 %v664, 112
        %v760 = vpop.permute.xlu0 %759
        %761 = vrot.lane.b32.xlu0 %v666, 112
        %v762 = vpop.permute.xlu0 %761
        %763 = vrot.lane.b32.xlu0 %v668, 112
        %v764 = vpop.permute.xlu0 %763
        %765 = vrot.lane.b32.xlu0 %v670, 112
        %v766 = vpop.permute.xlu0 %765
        %767 = vrot.lane.b32.xlu0 %v672, 112
        %v768 = vpop.permute.xlu0 %767
        %769 = vrot.lane.b32.xlu0 %v674, 112
        %v770 = vpop.permute.xlu0 %769
        %771 = vrot.lane.b32.xlu0 %v676, 112
        %v772 = vpop.permute.xlu0 %771
        %773 = vrot.lane.b32.xlu0 %v678, 112
        %v774 = vpop.permute.xlu0 %773
        %775 = vrot.lane.b32.xlu0 %v680, 112
        %v776 = vpop.permute.xlu0 %775
        %777 = vrot.lane.b32.xlu0 %v682, 112
        %v778 = vpop.permute.xlu0 %777
        %779 = vrot.lane.b32.xlu0 %v684, 112
        %v780 = vpop.permute.xlu0 %779
        %781 = vrot.lane.b32.xlu0 %v686, 112
        %v782 = vpop.permute.xlu0 %781
        %783 = vrot.lane.b32.xlu0 %v688, 112
        %v784 = vpop.permute.xlu0 %783
        %785 = vrot.lane.b32.xlu0 %v690, 112
        %v786 = vpop.permute.xlu0 %785
        %787 = vrot.lane.b32.xlu0 %v692, 112
        %v788 = vpop.permute.xlu0 %787
        %789 = vrot.lane.b32.xlu0 %v694, 112
        %v790 = vpop.permute.xlu0 %789
        %791 = vrot.lane.b32.xlu0 %v696, 112
        %v792 = vpop.permute.xlu0 %791
        %793 = vrot.lane.b32.xlu0 %v698, 112
        %v794 = vpop.permute.xlu0 %793
        %795 = vrot.lane.b32.xlu0 %v700, 112
        %v796 = vpop.permute.xlu0 %795
        %797 = vrot.lane.b32.xlu0 %v702, 112
        %v798 = vpop.permute.xlu0 %797
        %799 = vrot.lane.b32.xlu0 %v704, 112
        %v800 = vpop.permute.xlu0 %799
        %801 = vrot.lane.b32.xlu0 %v706, 112
        %v802 = vpop.permute.xlu0 %801
        %803 = vrot.lane.b32.xlu0 %v708, 112
        %v804 = vpop.permute.xlu0 %803
        %805 = vrot.lane.b32.xlu0 %v710, 112
        %v806 = vpop.permute.xlu0 %805
        %807 = vrot.lane.b32.xlu0 %v712, 112
        %v808 = vpop.permute.xlu0 %807
        %809 = vrot.lane.b32.xlu0 %v714, 112
        %v810 = vpop.permute.xlu0 %809
        %811 = vrot.lane.b32.xlu0 %v716, 112
        %v812 = vpop.permute.xlu0 %811
        %813 = vrot.lane.b32.xlu0 %v718, 112
        %v814 = vpop.permute.xlu0 %813
        %815 = vrot.lane.b32.xlu0 %v720, 112
        %v816 = vpop.permute.xlu0 %815
        %817 = vrot.lane.b32.xlu0 %v722, 112
        %v818 = vpop.permute.xlu0 %817
        %819 = vrot.lane.b32.xlu0 %v724, 112
        %v820 = vpop.permute.xlu0 %819
        %v853 = vmul.f32 %v348, %v758
        %v854 = vmul.f32 %v349, %v760
        %v855 = vmul.f32 %v350, %v762
        %v856 = vmul.f32 %v351, %v764
        %v857 = vmul.f32 %v352, %v766
        %v858 = vmul.f32 %v353, %v768
        %v859 = vmul.f32 %v354, %v770
        %v860 = vmul.f32 %v355, %v772
        %v861 = vmul.f32 %v356, %v774
        %v862 = vmul.f32 %v357, %v776
        %v863 = vmul.f32 %v358, %v778
        %v864 = vmul.f32 %v359, %v780
        %v865 = vmul.f32 %v360, %v782
        %v866 = vmul.f32 %v361, %v784
        %v867 = vmul.f32 %v362, %v786
        %v868 = vmul.f32 %v363, %v788
        %v869 = vmul.f32 %v364, %v790
        %v870 = vmul.f32 %v365, %v792
        %v871 = vmul.f32 %v366, %v794
        %v872 = vmul.f32 %v367, %v796
        %v873 = vmul.f32 %v368, %v798
        %v874 = vmul.f32 %v369, %v800
        %v875 = vmul.f32 %v370, %v802
        %v876 = vmul.f32 %v371, %v804
        %v877 = vmul.f32 %v372, %v806
        %v878 = vmul.f32 %v373, %v808
        %v879 = vmul.f32 %v374, %v810
        %v880 = vmul.f32 %v375, %v812
        %v881 = vmul.f32 %v376, %v814
        %v882 = vmul.f32 %v377, %v816
        %v883 = vmul.f32 %v378, %v818
        %v884 = vmul.f32 %v379, %v820
        %v885 = vadd.f32 %v503, %v853
        %v886 = vadd.f32 %v506, %v854
        %v887 = vadd.f32 %v511, %v855
        %v888 = vadd.f32 %v514, %v856
        %v889 = vadd.f32 %v519, %v857
        %v890 = vadd.f32 %v522, %v858
        %v891 = vadd.f32 %v527, %v859
        %v892 = vadd.f32 %v530, %v860
        %v893 = vadd.f32 %v535, %v861
        %v894 = vadd.f32 %v538, %v862
        %v895 = vadd.f32 %v543, %v863
        %v896 = vadd.f32 %v546, %v864
        %v897 = vadd.f32 %v551, %v865
        %v898 = vadd.f32 %v554, %v866
        %v899 = vadd.f32 %v559, %v867
        %v900 = vadd.f32 %v562, %v868
        %v901 = vadd.f32 %v567, %v869
        %v902 = vadd.f32 %v570, %v870
        %v903 = vadd.f32 %v575, %v871
        %v904 = vadd.f32 %v578, %v872
        %v905 = vadd.f32 %v583, %v873
        %v906 = vadd.f32 %v586, %v874
        %v907 = vadd.f32 %v591, %v875
        %v908 = vadd.f32 %v594, %v876
        %v909 = vadd.f32 %v599, %v877
        %v910 = vadd.f32 %v602, %v878
        %v911 = vadd.f32 %v607, %v879
        %v912 = vadd.f32 %v610, %v880
        %v913 = vadd.f32 %v615, %v881
        %v914 = vadd.f32 %v618, %v882
        %v915 = vadd.f32 %v623, %v883
        %v916 = vadd.f32 %v626, %v884
        %v917 = vpack.c.bf16 %v886, %v885
        %v918 = vpack.c.bf16 %v888, %v887
        %v919 = vpack.c.bf16 %v890, %v889
        %v920 = vpack.c.bf16 %v892, %v891
        %v921 = vpack.c.bf16 %v894, %v893
        %v922 = vpack.c.bf16 %v896, %v895
        %v923 = vpack.c.bf16 %v898, %v897
        %v924 = vpack.c.bf16 %v900, %v899
        %v925 = vpack.c.bf16 %v902, %v901
        %v926 = vpack.c.bf16 %v904, %v903
        %v927 = vpack.c.bf16 %v906, %v905
        %v928 = vpack.c.bf16 %v908, %v907
        %v929 = vpack.c.bf16 %v910, %v909
        %v930 = vpack.c.bf16 %v912, %v911
        %v931 = vpack.c.bf16 %v914, %v913
        %v932 = vpack.c.bf16 %v916, %v915
        %v933 = vld [vmem:[%s4] sm:$0xf]
        %v934 = vld [vmem:[%s4 + $0x4] sm:$0xf]
        %v935 = vld [vmem:[%s5] sm:$0x1]
        %v937 = vlaneseq
        %v938 = vshrl.u32 %v937, 7
        %v939 = vsub.s32 0, %v938
        %v940 = vrot.slane %v935, %v939
        %v944 = vunpack.c.l.b16 %v933
        %v945 = vunpack.c.l.b16 %v934
        %v946 = vpack.c.b16 %v945, %v944
        %vm948 = vcmask 130048
        %v950 = vsel %vm948, %v917, 0
        %v953 = vsel %vm948, %v918, 0
        %v956 = vsel %vm948, %v919, 0
        %v959 = vsel %vm948, %v920, 0
        %v962 = vsel %vm948, %v921, 0
        %v965 = vsel %vm948, %v922, 0
        %v968 = vsel %vm948, %v923, 0
        %v971 = vsel %vm948, %v924, 0
        %v974 = vsel %vm948, %v925, 0
        %v977 = vsel %vm948, %v926, 0
        %v980 = vsel %vm948, %v927, 0
        %v983 = vsel %vm948, %v928, 0
        %v986 = vsel %vm948, %v929, 0
        %v989 = vsel %vm948, %v930, 0
        %v992 = vsel %vm948, %v931, 0
        %v995 = vsel %vm948, %v932, 0
        %997 = vmatprep.subr.bf16.mxu0 0
        %998 = vmatpush1.bf16.msra.mxu0 0
        %999 = vmatprep.subr.bf16.mxu0 0
        %1000 = vmatpush1.bf16.msra.mxu0 0
        %1001 = vmatprep.subr.bf16.mxu0 0
        %1002 = vmatpush1.bf16.msra.mxu0 0
        %1003 = vmatprep.subr.bf16.mxu0 0
        %1004 = vmatpush1.bf16.msra.mxu0 0
        %1005 = vmatprep.subr.bf16.mxu0 0
        %1006 = vmatpush1.bf16.msra.mxu0 0
        %1007 = vmatprep.subr.bf16.mxu0 0
        %1008 = vmatpush1.bf16.msra.mxu0 0
        %1009 = vmatprep.subr.bf16.mxu0 0
        %1010 = vmatpush1.bf16.msra.mxu0 0
        %1011 = vmatprep.subr.bf16.mxu0 0
        %1012 = vmatpush1.bf16.msra.mxu0 %v946
        %1013 = vmatprep.subr.bf16.mxu0 0
        %1014 = vmatpush2.bf16.msra.mxu0 0
        %1015 = vmatprep.subr.bf16.mxu0 0
        %1016 = vmatpush2.bf16.msra.mxu0 0
        %1017 = vmatprep.subr.bf16.mxu0 0
        %1018 = vmatpush2.bf16.msra.mxu0 0
        %1019 = vmatprep.subr.bf16.mxu0 0
        %1020 = vmatpush2.bf16.msra.mxu0 0
        %1021 = vmatprep.subr.bf16.mxu0 0
        %1022 = vmatpush2.bf16.msra.mxu0 0
        %1023 = vmatprep.subr.bf16.mxu0 0
        %1024 = vmatpush2.bf16.msra.mxu0 0
        %1025 = vmatprep.subr.bf16.mxu0 0
        %1026 = vmatpush2.bf16.msra.mxu0 0
        %1027 = vmatprep.subr.bf16.mxu0 0
        %1028 = vmatpush2.bf16.msra.mxu0 0
        %1029 = vmatprep.mubr.bf16.mxu0 0
        %1030 = vmatmul.mubr.bf16.gmra.mxu0 %v950
        %v1031 = vpop.f32.mrf.mxu0
        %v1032 = vadd.f32 %v940, %v1031
        %v1033 = vpop.f32.mrf.mxu0
        %v1034 = vpop.f32.mrf.mxu0
        %v1035 = vadd.f32 %v940, %v1034
        %v1036 = vpop.f32.mrf.mxu0
        %1037 = vmatprep.mubr.bf16.mxu0 0
        %1038 = vmatmul.mubr.bf16.gmra.mxu0 %v953
        %v1039 = vpop.f32.mrf.mxu0
        %v1040 = vadd.f32 %v940, %v1039
        %v1041 = vpop.f32.mrf.mxu0
        %v1042 = vpop.f32.mrf.mxu0
        %v1043 = vadd.f32 %v940, %v1042
        %v1044 = vpop.f32.mrf.mxu0
        %1045 = vmatprep.mubr.bf16.mxu0 0
        %1046 = vmatmul.mubr.bf16.gmra.mxu0 %v956
        %v1047 = vpop.f32.mrf.mxu0
        %v1048 = vadd.f32 %v940, %v1047
        %v1049 = vpop.f32.mrf.mxu0
        %v1050 = vpop.f32.mrf.mxu0
        %v1051 = vadd.f32 %v940, %v1050
        %v1052 = vpop.f32.mrf.mxu0
        %1053 = vmatprep.mubr.bf16.mxu0 0
        %1054 = vmatmul.mubr.bf16.gmra.mxu0 %v959
        %v1055 = vpop.f32.mrf.mxu0
        %v1056 = vadd.f32 %v940, %v1055
        %v1057 = vpop.f32.mrf.mxu0
        %v1058 = vpop.f32.mrf.mxu0
        %v1059 = vadd.f32 %v940, %v1058
        %v1060 = vpop.f32.mrf.mxu0
        %1061 = vmatprep.mubr.bf16.mxu0 0
        %1062 = vmatmul.mubr.bf16.gmra.mxu0 %v962
        %v1063 = vpop.f32.mrf.mxu0
        %v1064 = vadd.f32 %v940, %v1063
        %v1065 = vpop.f32.mrf.mxu0
        %v1066 = vpop.f32.mrf.mxu0
        %v1067 = vadd.f32 %v940, %v1066
        %v1068 = vpop.f32.mrf.mxu0
        %1069 = vmatprep.mubr.bf16.mxu0 0
        %1070 = vmatmul.mubr.bf16.gmra.mxu0 %v965
        %v1071 = vpop.f32.mrf.mxu0
        %v1072 = vadd.f32 %v940, %v1071
        %v1073 = vpop.f32.mrf.mxu0
        %v1074 = vpop.f32.mrf.mxu0
        %v1075 = vadd.f32 %v940, %v1074
        %v1076 = vpop.f32.mrf.mxu0
        %1077 = vmatprep.mubr.bf16.mxu0 0
        %1078 = vmatmul.mubr.bf16.gmra.mxu0 %v968
        %v1079 = vpop.f32.mrf.mxu0
        %v1080 = vadd.f32 %v940, %v1079
        %v1081 = vpop.f32.mrf.mxu0
        %v1082 = vpop.f32.mrf.mxu0
        %v1083 = vadd.f32 %v940, %v1082
        %v1084 = vpop.f32.mrf.mxu0
        %1085 = vmatprep.mubr.bf16.mxu0 0
        %1086 = vmatmul.mubr.bf16.gmra.mxu0 %v971
        %v1087 = vpop.f32.mrf.mxu0
        %v1088 = vadd.f32 %v940, %v1087
        %v1089 = vpop.f32.mrf.mxu0
        %v1090 = vpop.f32.mrf.mxu0
        %v1091 = vadd.f32 %v940, %v1090
        %v1092 = vpop.f32.mrf.mxu0
        %1093 = vmatprep.mubr.bf16.mxu0 0
        %1094 = vmatmul.mubr.bf16.gmra.mxu0 %v974
        %v1095 = vpop.f32.mrf.mxu0
        %v1096 = vadd.f32 %v940, %v1095
        %v1097 = vpop.f32.mrf.mxu0
        %v1098 = vpop.f32.mrf.mxu0
        %v1099 = vadd.f32 %v940, %v1098
        %v1100 = vpop.f32.mrf.mxu0
        %1101 = vmatprep.mubr.bf16.mxu0 0
        %1102 = vmatmul.mubr.bf16.gmra.mxu0 %v977
        %v1103 = vpop.f32.mrf.mxu0
        %v1104 = vadd.f32 %v940, %v1103
        %v1105 = vpop.f32.mrf.mxu0
        %v1106 = vpop.f32.mrf.mxu0
        %v1107 = vadd.f32 %v940, %v1106
        %v1108 = vpop.f32.mrf.mxu0
        %1109 = vmatprep.mubr.bf16.mxu0 0
        %1110 = vmatmul.mubr.bf16.gmra.mxu0 %v980
        %v1111 = vpop.f32.mrf.mxu0
        %v1112 = vadd.f32 %v940, %v1111
        %v1113 = vpop.f32.mrf.mxu0
        %v1114 = vpop.f32.mrf.mxu0
        %v1115 = vadd.f32 %v940, %v1114
        %v1116 = vpop.f32.mrf.mxu0
        %1117 = vmatprep.mubr.bf16.mxu0 0
        %1118 = vmatmul.mubr.bf16.gmra.mxu0 %v983
        %v1119 = vpop.f32.mrf.mxu0
        %v1120 = vadd.f32 %v940, %v1119
        %v1121 = vpop.f32.mrf.mxu0
        %v1122 = vpop.f32.mrf.mxu0
        %v1123 = vadd.f32 %v940, %v1122
        %v1124 = vpop.f32.mrf.mxu0
        %1125 = vmatprep.mubr.bf16.mxu0 0
        %1126 = vmatmul.mubr.bf16.gmra.mxu0 %v986
        %v1127 = vpop.f32.mrf.mxu0
        %v1128 = vadd.f32 %v940, %v1127
        %v1129 = vpop.f32.mrf.mxu0
        %v1130 = vpop.f32.mrf.mxu0
        %v1131 = vadd.f32 %v940, %v1130
        %v1132 = vpop.f32.mrf.mxu0
        %1133 = vmatprep.mubr.bf16.mxu0 0
        %1134 = vmatmul.mubr.bf16.gmra.mxu0 %v989
        %v1135 = vpop.f32.mrf.mxu0
        %v1136 = vadd.f32 %v940, %v1135
        %v1137 = vpop.f32.mrf.mxu0
        %v1138 = vpop.f32.mrf.mxu0
        %v1139 = vadd.f32 %v940, %v1138
        %v1140 = vpop.f32.mrf.mxu0
        %1141 = vmatprep.mubr.bf16.mxu0 0
        %1142 = vmatmul.mubr.bf16.gmra.mxu0 %v992
        %v1143 = vpop.f32.mrf.mxu0
        %v1144 = vadd.f32 %v940, %v1143
        %v1145 = vpop.f32.mrf.mxu0
        %v1146 = vpop.f32.mrf.mxu0
        %v1147 = vadd.f32 %v940, %v1146
        %v1148 = vpop.f32.mrf.mxu0
        %1149 = vmatprep.mubr.bf16.mxu0 0
        %1150 = vmatmul.mubr.bf16.gmra.mxu0 %v995
        %v1151 = vpop.f32.mrf.mxu0
        %v1152 = vadd.f32 %v940, %v1151
        %v1153 = vpop.f32.mrf.mxu0
        %v1154 = vpop.f32.mrf.mxu0
        %v1155 = vadd.f32 %v940, %v1154
        %v1156 = vpop.f32.mrf.mxu0
        %1157 = vdwg.mxu0
        %1190 = vrot.lane.b32.xlu0 %v885, 32
        %v1191 = vpop.permute.xlu0 %1190
        %1192 = vrot.lane.b32.xlu0 %v886, 32
        %v1193 = vpop.permute.xlu0 %1192
        %1194 = vrot.lane.b32.xlu0 %v887, 32
        %v1195 = vpop.permute.xlu0 %1194
        %1196 = vrot.lane.b32.xlu0 %v888, 32
        %v1197 = vpop.permute.xlu0 %1196
        %1198 = vrot.lane.b32.xlu0 %v889, 32
        %v1199 = vpop.permute.xlu0 %1198
        %1200 = vrot.lane.b32.xlu0 %v890, 32
        %v1201 = vpop.permute.xlu0 %1200
        %1202 = vrot.lane.b32.xlu0 %v891, 32
        %v1203 = vpop.permute.xlu0 %1202
        %1204 = vrot.lane.b32.xlu0 %v892, 32
        %v1205 = vpop.permute.xlu0 %1204
        %1206 = vrot.lane.b32.xlu0 %v893, 32
        %v1207 = vpop.permute.xlu0 %1206
        %1208 = vrot.lane.b32.xlu0 %v894, 32
        %v1209 = vpop.permute.xlu0 %1208
        %1210 = vrot.lane.b32.xlu0 %v895, 32
        %v1211 = vpop.permute.xlu0 %1210
        %1212 = vrot.lane.b32.xlu0 %v896, 32
        %v1213 = vpop.permute.xlu0 %1212
        %1214 = vrot.lane.b32.xlu0 %v897, 32
        %v1215 = vpop.permute.xlu0 %1214
        %1216 = vrot.lane.b32.xlu0 %v898, 32
        %v1217 = vpop.permute.xlu0 %1216
        %1218 = vrot.lane.b32.xlu0 %v899, 32
        %v1219 = vpop.permute.xlu0 %1218
        %1220 = vrot.lane.b32.xlu0 %v900, 32
        %v1221 = vpop.permute.xlu0 %1220
        %1222 = vrot.lane.b32.xlu0 %v901, 32
        %v1223 = vpop.permute.xlu0 %1222
        %1224 = vrot.lane.b32.xlu0 %v902, 32
        %v1225 = vpop.permute.xlu0 %1224
        %1226 = vrot.lane.b32.xlu0 %v903, 32
        %v1227 = vpop.permute.xlu0 %1226
        %1228 = vrot.lane.b32.xlu0 %v904, 32
        %v1229 = vpop.permute.xlu0 %1228
        %1230 = vrot.lane.b32.xlu0 %v905, 32
        %v1231 = vpop.permute.xlu0 %1230
        %1232 = vrot.lane.b32.xlu0 %v906, 32
        %v1233 = vpop.permute.xlu0 %1232
        %1234 = vrot.lane.b32.xlu0 %v907, 32
        %v1235 = vpop.permute.xlu0 %1234
        %1236 = vrot.lane.b32.xlu0 %v908, 32
        %v1237 = vpop.permute.xlu0 %1236
        %1238 = vrot.lane.b32.xlu0 %v909, 32
        %v1239 = vpop.permute.xlu0 %1238
        %1240 = vrot.lane.b32.xlu0 %v910, 32
        %v1241 = vpop.permute.xlu0 %1240
        %1242 = vrot.lane.b32.xlu0 %v911, 32
        %v1243 = vpop.permute.xlu0 %1242
        %1244 = vrot.lane.b32.xlu0 %v912, 32
        %v1245 = vpop.permute.xlu0 %1244
        %1246 = vrot.lane.b32.xlu0 %v913, 32
        %v1247 = vpop.permute.xlu0 %1246
        %1248 = vrot.lane.b32.xlu0 %v914, 32
        %v1249 = vpop.permute.xlu0 %1248
        %1250 = vrot.lane.b32.xlu0 %v915, 32
        %v1251 = vpop.permute.xlu0 %1250
        %1252 = vrot.lane.b32.xlu0 %v916, 32
        %v1253 = vpop.permute.xlu0 %1252
        %1318 = vrot.lane.b32.xlu0 %v503, 48
        %v1319 = vpop.permute.xlu0 %1318
        %1320 = vrot.lane.b32.xlu0 %v506, 48
        %v1321 = vpop.permute.xlu0 %1320
        %1322 = vrot.lane.b32.xlu0 %v511, 48
        %v1323 = vpop.permute.xlu0 %1322
        %1324 = vrot.lane.b32.xlu0 %v514, 48
        %v1325 = vpop.permute.xlu0 %1324
        %1326 = vrot.lane.b32.xlu0 %v519, 48
        %v1327 = vpop.permute.xlu0 %1326
        %1328 = vrot.lane.b32.xlu0 %v522, 48
        %v1329 = vpop.permute.xlu0 %1328
        %1330 = vrot.lane.b32.xlu0 %v527, 48
        %v1331 = vpop.permute.xlu0 %1330
        %1332 = vrot.lane.b32.xlu0 %v530, 48
        %v1333 = vpop.permute.xlu0 %1332
        %1334 = vrot.lane.b32.xlu0 %v535, 48
        %v1335 = vpop.permute.xlu0 %1334
        %1336 = vrot.lane.b32.xlu0 %v538, 48
        %v1337 = vpop.permute.xlu0 %1336
        %1338 = vrot.lane.b32.xlu0 %v543, 48
        %v1339 = vpop.permute.xlu0 %1338
        %1340 = vrot.lane.b32.xlu0 %v546, 48
        %v1341 = vpop.permute.xlu0 %1340
        %1342 = vrot.lane.b32.xlu0 %v551, 48
        %v1343 = vpop.permute.xlu0 %1342
        %1344 = vrot.lane.b32.xlu0 %v554, 48
        %v1345 = vpop.permute.xlu0 %1344
        %1346 = vrot.lane.b32.xlu0 %v559, 48
        %v1347 = vpop.permute.xlu0 %1346
        %1348 = vrot.lane.b32.xlu0 %v562, 48
        %v1349 = vpop.permute.xlu0 %1348
        %1350 = vrot.lane.b32.xlu0 %v567, 48
        %v1351 = vpop.permute.xlu0 %1350
        %1352 = vrot.lane.b32.xlu0 %v570, 48
        %v1353 = vpop.permute.xlu0 %1352
        %1354 = vrot.lane.b32.xlu0 %v575, 48
        %v1355 = vpop.permute.xlu0 %1354
        %1356 = vrot.lane.b32.xlu0 %v578, 48
        %v1357 = vpop.permute.xlu0 %1356
        %1358 = vrot.lane.b32.xlu0 %v583, 48
        %v1359 = vpop.permute.xlu0 %1358
        %1360 = vrot.lane.b32.xlu0 %v586, 48
        %v1361 = vpop.permute.xlu0 %1360
        %1362 = vrot.lane.b32.xlu0 %v591, 48
        %v1363 = vpop.permute.xlu0 %1362
        %1364 = vrot.lane.b32.xlu0 %v594, 48
        %v1365 = vpop.permute.xlu0 %1364
        %1366 = vrot.lane.b32.xlu0 %v599, 48
        %v1367 = vpop.permute.xlu0 %1366
        %1368 = vrot.lane.b32.xlu0 %v602, 48
        %v1369 = vpop.permute.xlu0 %1368
        %1370 = vrot.lane.b32.xlu0 %v607, 48
        %v1371 = vpop.permute.xlu0 %1370
        %1372 = vrot.lane.b32.xlu0 %v610, 48
        %v1373 = vpop.permute.xlu0 %1372
        %1374 = vrot.lane.b32.xlu0 %v615, 48
        %v1375 = vpop.permute.xlu0 %1374
        %1376 = vrot.lane.b32.xlu0 %v618, 48
        %v1377 = vpop.permute.xlu0 %1376
        %1378 = vrot.lane.b32.xlu0 %v623, 48
        %v1379 = vpop.permute.xlu0 %1378
        %1380 = vrot.lane.b32.xlu0 %v626, 48
        %v1381 = vpop.permute.xlu0 %1380
        %v1414 = vsel %vm419, %v1032, %v1191
        %v1415 = vsel %vm419, %v1035, %v1193
        %v1416 = vsel %vm419, %v1040, %v1195
        %v1417 = vsel %vm419, %v1043, %v1197
        %v1418 = vsel %vm419, %v1048, %v1199
        %v1419 = vsel %vm419, %v1051, %v1201
        %v1420 = vsel %vm419, %v1056, %v1203
        %v1421 = vsel %vm419, %v1059, %v1205
        %v1422 = vsel %vm419, %v1064, %v1207
        %v1423 = vsel %vm419, %v1067, %v1209
        %v1424 = vsel %vm419, %v1072, %v1211
        %v1425 = vsel %vm419, %v1075, %v1213
        %v1426 = vsel %vm419, %v1080, %v1215
        %v1427 = vsel %vm419, %v1083, %v1217
        %v1428 = vsel %vm419, %v1088, %v1219
        %v1429 = vsel %vm419, %v1091, %v1221
        %v1430 = vsel %vm419, %v1096, %v1223
        %v1431 = vsel %vm419, %v1099, %v1225
        %v1432 = vsel %vm419, %v1104, %v1227
        %v1433 = vsel %vm419, %v1107, %v1229
        %v1434 = vsel %vm419, %v1112, %v1231
        %v1435 = vsel %vm419, %v1115, %v1233
        %v1436 = vsel %vm419, %v1120, %v1235
        %v1437 = vsel %vm419, %v1123, %v1237
        %v1438 = vsel %vm419, %v1128, %v1239
        %v1439 = vsel %vm419, %v1131, %v1241
        %v1440 = vsel %vm419, %v1136, %v1243
        %v1441 = vsel %vm419, %v1139, %v1245
        %v1442 = vsel %vm419, %v1144, %v1247
        %v1443 = vsel %vm419, %v1147, %v1249
        %v1444 = vsel %vm419, %v1152, %v1251
        %v1445 = vsel %vm419, %v1155, %v1253
        %vm1446 = vcmask 392192
        %v1447 = vsel %vm1446, %v1414, %v1319
        %v1448 = vsel %vm1446, %v1415, %v1321
        %v1449 = vsel %vm1446, %v1416, %v1323
        %v1450 = vsel %vm1446, %v1417, %v1325
        %v1451 = vsel %vm1446, %v1418, %v1327
        %v1452 = vsel %vm1446, %v1419, %v1329
        %v1453 = vsel %vm1446, %v1420, %v1331
        %v1454 = vsel %vm1446, %v1421, %v1333
        %v1455 = vsel %vm1446, %v1422, %v1335
        %v1456 = vsel %vm1446, %v1423, %v1337
        %v1457 = vsel %vm1446, %v1424, %v1339
        %v1458 = vsel %vm1446, %v1425, %v1341
        %v1459 = vsel %vm1446, %v1426, %v1343
        %v1460 = vsel %vm1446, %v1427, %v1345
        %v1461 = vsel %vm1446, %v1428, %v1347
        %v1462 = vsel %vm1446, %v1429, %v1349
        %v1463 = vsel %vm1446, %v1430, %v1351
        %v1464 = vsel %vm1446, %v1431, %v1353
        %v1465 = vsel %vm1446, %v1432, %v1355
        %v1466 = vsel %vm1446, %v1433, %v1357
        %v1467 = vsel %vm1446, %v1434, %v1359
        %v1468 = vsel %vm1446, %v1435, %v1361
        %v1469 = vsel %vm1446, %v1436, %v1363
        %v1470 = vsel %vm1446, %v1437, %v1365
        %v1471 = vsel %vm1446, %v1438, %v1367
        %v1472 = vsel %vm1446, %v1439, %v1369
        %v1473 = vsel %vm1446, %v1440, %v1371
        %v1474 = vsel %vm1446, %v1441, %v1373
        %v1475 = vsel %vm1446, %v1442, %v1375
        %v1476 = vsel %vm1446, %v1443, %v1377
        %v1477 = vsel %vm1446, %v1444, %v1379
        %v1478 = vsel %vm1446, %v1445, %v1381
        %vm1479 = vcmask 523264
        %v1480 = vsel %vm1479, %v1447, %v1319
        %v1481 = vsel %vm1479, %v1448, %v1321
        %v1482 = vsel %vm1479, %v1449, %v1323
        %v1483 = vsel %vm1479, %v1450, %v1325
        %v1484 = vsel %vm1479, %v1451, %v1327
        %v1485 = vsel %vm1479, %v1452, %v1329
        %v1486 = vsel %vm1479, %v1453, %v1331
        %v1487 = vsel %vm1479, %v1454, %v1333
        %v1488 = vsel %vm1479, %v1455, %v1335
        %v1489 = vsel %vm1479, %v1456, %v1337
        %v1490 = vsel %vm1479, %v1457, %v1339
        %v1491 = vsel %vm1479, %v1458, %v1341
        %v1492 = vsel %vm1479, %v1459, %v1343
        %v1493 = vsel %vm1479, %v1460, %v1345
        %v1494 = vsel %vm1479, %v1461, %v1347
        %v1495 = vsel %vm1479, %v1462, %v1349
        %v1496 = vsel %vm1479, %v1463, %v1351
        %v1497 = vsel %vm1479, %v1464, %v1353
        %v1498 = vsel %vm1479, %v1465, %v1355
        %v1499 = vsel %vm1479, %v1466, %v1357
        %v1500 = vsel %vm1479, %v1467, %v1359
        %v1501 = vsel %vm1479, %v1468, %v1361
        %v1502 = vsel %vm1479, %v1469, %v1363
        %v1503 = vsel %vm1479, %v1470, %v1365
        %v1504 = vsel %vm1479, %v1471, %v1367
        %v1505 = vsel %vm1479, %v1472, %v1369
        %v1506 = vsel %vm1479, %v1473, %v1371
        %v1507 = vsel %vm1479, %v1474, %v1373
        %v1508 = vsel %vm1479, %v1475, %v1375
        %v1509 = vsel %vm1479, %v1476, %v1377
        %v1510 = vsel %vm1479, %v1477, %v1379
        %v1511 = vsel %vm1479, %v1478, %v1381
        %vm1512 = vcmask 654336
        %1513 = vst.msk [vmem:[%s313] sm:$0xff] %vm1512, %v1480
        %1514 = vst.msk [vmem:[%s313 + $0x8] sm:$0xff] %vm1512, %v1481
        %1515 = vst.msk [vmem:[%s313 + $0x10] sm:$0xff] %vm1512, %v1482
        %1516 = vst.msk [vmem:[%s313 + $0x18] sm:$0xff] %vm1512, %v1483
        %1517 = vst.msk [vmem:[%s313 + $0x20] sm:$0xff] %vm1512, %v1484
        %1518 = vst.msk [vmem:[%s313 + $0x28] sm:$0xff] %vm1512, %v1485
        %1519 = vst.msk [vmem:[%s313 + $0x30] sm:$0xff] %vm1512, %v1486
        %1520 = vst.msk [vmem:[%s313 + $0x38] sm:$0xff] %vm1512, %v1487
        %1521 = vst.msk [vmem:[%s313 + $0x40] sm:$0xff] %vm1512, %v1488
        %1522 = vst.msk [vmem:[%s313 + $0x48] sm:$0xff] %vm1512, %v1489
        %1523 = vst.msk [vmem:[%s313 + $0x50] sm:$0xff] %vm1512, %v1490
        %1524 = vst.msk [vmem:[%s313 + $0x58] sm:$0xff] %vm1512, %v1491
        %1525 = vst.msk [vmem:[%s313 + $0x60] sm:$0xff] %vm1512, %v1492
        %1526 = vst.msk [vmem:[%s313 + $0x68] sm:$0xff] %vm1512, %v1493
        %1527 = vst.msk [vmem:[%s313 + $0x70] sm:$0xff] %vm1512, %v1494
        %1528 = vst.msk [vmem:[%s313 + $0x78] sm:$0xff] %vm1512, %v1495
        %1529 = vst.msk [vmem:[%s313 + $0x80] sm:$0xff] %vm1512, %v1496
        %1530 = vst.msk [vmem:[%s313 + $0x88] sm:$0xff] %vm1512, %v1497
        %1531 = vst.msk [vmem:[%s313 + $0x90] sm:$0xff] %vm1512, %v1498
        %1532 = vst.msk [vmem:[%s313 + $0x98] sm:$0xff] %vm1512, %v1499
        %1533 = vst.msk [vmem:[%s313 + $0xa0] sm:$0xff] %vm1512, %v1500
        %1534 = vst.msk [vmem:[%s313 + $0xa8] sm:$0xff] %vm1512, %v1501
        %1535 = vst.msk [vmem:[%s313 + $0xb0] sm:$0xff] %vm1512, %v1502
        %1536 = vst.msk [vmem:[%s313 + $0xb8] sm:$0xff] %vm1512, %v1503
        %1537 = vst.msk [vmem:[%s313 + $0xc0] sm:$0xff] %vm1512, %v1504
        %1538 = vst.msk [vmem:[%s313 + $0xc8] sm:$0xff] %vm1512, %v1505
        %1539 = vst.msk [vmem:[%s313 + $0xd0] sm:$0xff] %vm1512, %v1506
        %1540 = vst.msk [vmem:[%s313 + $0xd8] sm:$0xff] %vm1512, %v1507
        %1541 = vst.msk [vmem:[%s313 + $0xe0] sm:$0xff] %vm1512, %v1508
        %1542 = vst.msk [vmem:[%s313 + $0xe8] sm:$0xff] %vm1512, %v1509
        %1543 = vst.msk [vmem:[%s313 + $0xf0] sm:$0xff] %vm1512, %v1510
        %1544 = vst.msk [vmem:[%s313 + $0xf8] sm:$0xff] %vm1512, %v1511
        %s1545 = smul.u32 %s22, 256
        %v1546 = vlaneseq
        %v1547 = vshrl.u32 %v1546, 7
        %v1548 = vadd.s32 %v1547, 8
        %v1549 = vadd.s32 %v1547, 16
        %v1550 = vadd.s32 %v1547, 24
        %v1551 = vadd.s32 %v1547, 32
        %v1552 = vadd.s32 %v1547, 40
        %v1553 = vadd.s32 %v1547, 48
        %v1554 = vadd.s32 %v1547, 56
        %v1555 = vadd.s32 %v1547, 64
        %v1556 = vadd.s32 %v1547, 72
        %v1557 = vadd.s32 %v1547, 80
        %v1558 = vadd.s32 %v1547, 88
        %v1559 = vadd.s32 %v1547, 96
        %v1560 = vadd.s32 %v1547, 104
        %v1561 = vadd.s32 %v1547, 112
        %v1562 = vadd.s32 %v1547, 120
        %v1563 = vadd.s32 %v1547, 128
        %v1564 = vadd.s32 %v1547, 136
        %v1565 = vadd.s32 %v1547, 144
        %v1566 = vadd.s32 %v1547, 152
        %v1567 = vadd.s32 %v1547, 160
        %v1568 = vadd.s32 %v1547, 168
        %v1569 = vadd.s32 %v1547, 176
        %v1570 = vadd.s32 %v1547, 184
        %v1571 = vadd.s32 %v1547, 192
        %v1572 = vadd.s32 %v1547, 200
        %v1573 = vadd.s32 %v1547, 208
        %v1574 = vadd.s32 %v1547, 216
        %v1575 = vadd.s32 %v1547, 224
        %v1576 = vadd.s32 %v1547, 232
        %v1577 = vadd.s32 %v1547, 240
        %v1578 = vadd.s32 %v1547, 248
        %v1579 = vstv %s1545
        %v1580 = vadd.s32 %v1579, %v1547
        %v1581 = vadd.s32 %v1579, %v1548
        %v1582 = vadd.s32 %v1579, %v1549
        %v1583 = vadd.s32 %v1579, %v1550
        %v1584 = vadd.s32 %v1579, %v1551
        %v1585 = vadd.s32 %v1579, %v1552
        %v1586 = vadd.s32 %v1579, %v1553
        %v1587 = vadd.s32 %v1579, %v1554
        %v1588 = vadd.s32 %v1579, %v1555
        %v1589 = vadd.s32 %v1579, %v1556
        %v1590 = vadd.s32 %v1579, %v1557
        %v1591 = vadd.s32 %v1579, %v1558
        %v1592 = vadd.s32 %v1579, %v1559
        %v1593 = vadd.s32 %v1579, %v1560
        %v1594 = vadd.s32 %v1579, %v1561
        %v1595 = vadd.s32 %v1579, %v1562
        %v1596 = vadd.s32 %v1579, %v1563
        %v1597 = vadd.s32 %v1579, %v1564
        %v1598 = vadd.s32 %v1579, %v1565
        %v1599 = vadd.s32 %v1579, %v1566
        %v1600 = vadd.s32 %v1579, %v1567
        %v1601 = vadd.s32 %v1579, %v1568
        %v1602 = vadd.s32 %v1579, %v1569
        %v1603 = vadd.s32 %v1579, %v1570
        %v1604 = vadd.s32 %v1579, %v1571
        %v1605 = vadd.s32 %v1579, %v1572
        %v1606 = vadd.s32 %v1579, %v1573
        %v1607 = vadd.s32 %v1579, %v1574
        %v1608 = vadd.s32 %v1579, %v1575
        %v1609 = vadd.s32 %v1579, %v1576
        %v1610 = vadd.s32 %v1579, %v1577
        %v1611 = vadd.s32 %v1579, %v1578
        %vm1612 = vcmp.lt.s32.totalorder %v1580, 1000
        %vm1613 = vcmp.lt.s32.totalorder %v1581, 1000
        %vm1614 = vcmp.lt.s32.totalorder %v1582, 1000
        %vm1615 = vcmp.lt.s32.totalorder %v1583, 1000
        %vm1616 = vcmp.lt.s32.totalorder %v1584, 1000
        %vm1617 = vcmp.lt.s32.totalorder %v1585, 1000
        %vm1618 = vcmp.lt.s32.totalorder %v1586, 1000
        %vm1619 = vcmp.lt.s32.totalorder %v1587, 1000
        %vm1620 = vcmp.lt.s32.totalorder %v1588, 1000
        %vm1621 = vcmp.lt.s32.totalorder %v1589, 1000
        %vm1622 = vcmp.lt.s32.totalorder %v1590, 1000
        %vm1623 = vcmp.lt.s32.totalorder %v1591, 1000
        %vm1624 = vcmp.lt.s32.totalorder %v1592, 1000
        %vm1625 = vcmp.lt.s32.totalorder %v1593, 1000
        %vm1626 = vcmp.lt.s32.totalorder %v1594, 1000
        %vm1627 = vcmp.lt.s32.totalorder %v1595, 1000
        %vm1628 = vcmp.lt.s32.totalorder %v1596, 1000
        %vm1629 = vcmp.lt.s32.totalorder %v1597, 1000
        %vm1630 = vcmp.lt.s32.totalorder %v1598, 1000
        %vm1631 = vcmp.lt.s32.totalorder %v1599, 1000
        %vm1632 = vcmp.lt.s32.totalorder %v1600, 1000
        %vm1633 = vcmp.lt.s32.totalorder %v1601, 1000
        %vm1634 = vcmp.lt.s32.totalorder %v1602, 1000
        %vm1635 = vcmp.lt.s32.totalorder %v1603, 1000
        %vm1636 = vcmp.lt.s32.totalorder %v1604, 1000
        %vm1637 = vcmp.lt.s32.totalorder %v1605, 1000
        %vm1638 = vcmp.lt.s32.totalorder %v1606, 1000
        %vm1639 = vcmp.lt.s32.totalorder %v1607, 1000
        %vm1640 = vcmp.lt.s32.totalorder %v1608, 1000
        %vm1641 = vcmp.lt.s32.totalorder %v1609, 1000
        %vm1642 = vcmp.lt.s32.totalorder %v1610, 1000
        %vm1643 = vcmp.lt.s32.totalorder %v1611, 1000
        %v1644 = vsel %vm1612, 1, 0
        %v1645 = vsel %vm1613, 1, 0
        %v1646 = vsel %vm1614, 1, 0
        %v1647 = vsel %vm1615, 1, 0
        %v1648 = vsel %vm1616, 1, 0
        %v1649 = vsel %vm1617, 1, 0
        %v1650 = vsel %vm1618, 1, 0
        %v1651 = vsel %vm1619, 1, 0
        %v1652 = vsel %vm1620, 1, 0
        %v1653 = vsel %vm1621, 1, 0
        %v1654 = vsel %vm1622, 1, 0
        %v1655 = vsel %vm1623, 1, 0
        %v1656 = vsel %vm1624, 1, 0
        %v1657 = vsel %vm1625, 1, 0
        %v1658 = vsel %vm1626, 1, 0
        %v1659 = vsel %vm1627, 1, 0
        %v1660 = vsel %vm1628, 1, 0
        %v1661 = vsel %vm1629, 1, 0
        %v1662 = vsel %vm1630, 1, 0
        %v1663 = vsel %vm1631, 1, 0
        %v1664 = vsel %vm1632, 1, 0
        %v1665 = vsel %vm1633, 1, 0
        %v1666 = vsel %vm1634, 1, 0
        %v1667 = vsel %vm1635, 1, 0
        %v1668 = vsel %vm1636, 1, 0
        %v1669 = vsel %vm1637, 1, 0
        %v1670 = vsel %vm1638, 1, 0
        %v1671 = vsel %vm1639, 1, 0
        %v1672 = vsel %vm1640, 1, 0
        %v1673 = vsel %vm1641, 1, 0
        %v1674 = vsel %vm1642, 1, 0
        %v1675 = vsel %vm1643, 1, 0
        %v1676 = vcvt.s32.f32 %v1644
        %v1677 = vcvt.s32.f32 %v1645
        %v1678 = vcvt.s32.f32 %v1646
        %v1679 = vcvt.s32.f32 %v1647
        %v1680 = vcvt.s32.f32 %v1648
        %v1681 = vcvt.s32.f32 %v1649
        %v1682 = vcvt.s32.f32 %v1650
        %v1683 = vcvt.s32.f32 %v1651
        %v1684 = vcvt.s32.f32 %v1652
        %v1685 = vcvt.s32.f32 %v1653
        %v1686 = vcvt.s32.f32 %v1654
        %v1687 = vcvt.s32.f32 %v1655
        %v1688 = vcvt.s32.f32 %v1656
        %v1689 = vcvt.s32.f32 %v1657
        %v1690 = vcvt.s32.f32 %v1658
        %v1691 = vcvt.s32.f32 %v1659
        %v1692 = vcvt.s32.f32 %v1660
        %v1693 = vcvt.s32.f32 %v1661
        %v1694 = vcvt.s32.f32 %v1662
        %v1695 = vcvt.s32.f32 %v1663
        %v1696 = vcvt.s32.f32 %v1664
        %v1697 = vcvt.s32.f32 %v1665
        %v1698 = vcvt.s32.f32 %v1666
        %v1699 = vcvt.s32.f32 %v1667
        %v1700 = vcvt.s32.f32 %v1668
        %v1701 = vcvt.s32.f32 %v1669
        %v1702 = vcvt.s32.f32 %v1670
        %v1703 = vcvt.s32.f32 %v1671
        %v1704 = vcvt.s32.f32 %v1672
        %v1705 = vcvt.s32.f32 %v1673
        %v1706 = vcvt.s32.f32 %v1674
        %v1707 = vcvt.s32.f32 %v1675
        %v1708 = vsub.f32 %v1032, %v316
        %v1709 = vsub.f32 %v1035, %v317
        %v1710 = vsub.f32 %v1040, %v318
        %v1711 = vsub.f32 %v1043, %v319
        %v1712 = vsub.f32 %v1048, %v320
        %v1713 = vsub.f32 %v1051, %v321
        %v1714 = vsub.f32 %v1056, %v322
        %v1715 = vsub.f32 %v1059, %v323
        %v1716 = vsub.f32 %v1064, %v324
        %v1717 = vsub.f32 %v1067, %v325
        %v1718 = vsub.f32 %v1072, %v326
        %v1719 = vsub.f32 %v1075, %v327
        %v1720 = vsub.f32 %v1080, %v328
        %v1721 = vsub.f32 %v1083, %v329
        %v1722 = vsub.f32 %v1088, %v330
        %v1723 = vsub.f32 %v1091, %v331
        %v1724 = vsub.f32 %v1096, %v332
        %v1725 = vsub.f32 %v1099, %v333
        %v1726 = vsub.f32 %v1104, %v334
        %v1727 = vsub.f32 %v1107, %v335
        %v1728 = vsub.f32 %v1112, %v336
        %v1729 = vsub.f32 %v1115, %v337
        %v1730 = vsub.f32 %v1120, %v338
        %v1731 = vsub.f32 %v1123, %v339
        %v1732 = vsub.f32 %v1128, %v340
        %v1733 = vsub.f32 %v1131, %v341
        %v1734 = vsub.f32 %v1136, %v342
        %v1735 = vsub.f32 %v1139, %v343
        %v1736 = vsub.f32 %v1144, %v344
        %v1737 = vsub.f32 %v1147, %v345
        %v1738 = vsub.f32 %v1152, %v346
        %v1739 = vsub.f32 %v1155, %v347
        %v1740 = vmul.f32 %v1708, %v1708
        %v1741 = vmul.f32 %v1709, %v1709
        %v1742 = vmul.f32 %v1710, %v1710
        %v1743 = vmul.f32 %v1711, %v1711
        %v1744 = vmul.f32 %v1712, %v1712
        %v1745 = vmul.f32 %v1713, %v1713
        %v1746 = vmul.f32 %v1714, %v1714
        %v1747 = vmul.f32 %v1715, %v1715
        %v1748 = vmul.f32 %v1716, %v1716
        %v1749 = vmul.f32 %v1717, %v1717
        %v1750 = vmul.f32 %v1718, %v1718
        %v1751 = vmul.f32 %v1719, %v1719
        %v1752 = vmul.f32 %v1720, %v1720
        %v1753 = vmul.f32 %v1721, %v1721
        %v1754 = vmul.f32 %v1722, %v1722
        %v1755 = vmul.f32 %v1723, %v1723
        %v1756 = vmul.f32 %v1724, %v1724
        %v1757 = vmul.f32 %v1725, %v1725
        %v1758 = vmul.f32 %v1726, %v1726
        %v1759 = vmul.f32 %v1727, %v1727
        %v1760 = vmul.f32 %v1728, %v1728
        %v1761 = vmul.f32 %v1729, %v1729
        %v1762 = vmul.f32 %v1730, %v1730
        %v1763 = vmul.f32 %v1731, %v1731
        %v1764 = vmul.f32 %v1732, %v1732
        %v1765 = vmul.f32 %v1733, %v1733
        %v1766 = vmul.f32 %v1734, %v1734
        %v1767 = vmul.f32 %v1735, %v1735
        %v1768 = vmul.f32 %v1736, %v1736
        %v1769 = vmul.f32 %v1737, %v1737
        %v1770 = vmul.f32 %v1738, %v1738
        %v1771 = vmul.f32 %v1739, %v1739
        %v1772 = vsel %vm419, %v1740, 0.0
        %1773 = vadd.xlane.f32.xlu0 %v1772
        %v1774 = vpop.xlane.xlu0 %1773
        %v1775 = vsel %vm419, %v1741, 0.0
        %1776 = vadd.xlane.f32.xlu0 %v1775
        %v1777 = vpop.xlane.xlu0 %1776
        %v1778 = vsel %vm419, %v1742, 0.0
        %1779 = vadd.xlane.f32.xlu0 %v1778
        %v1780 = vpop.xlane.xlu0 %1779
        %v1781 = vsel %vm419, %v1743, 0.0
        %1782 = vadd.xlane.f32.xlu0 %v1781
        %v1783 = vpop.xlane.xlu0 %1782
        %v1784 = vsel %vm419, %v1744, 0.0
        %1785 = vadd.xlane.f32.xlu0 %v1784
        %v1786 = vpop.xlane.xlu0 %1785
        %v1787 = vsel %vm419, %v1745, 0.0
        %1788 = vadd.xlane.f32.xlu0 %v1787
        %v1789 = vpop.xlane.xlu0 %1788
        %v1790 = vsel %vm419, %v1746, 0.0
        %1791 = vadd.xlane.f32.xlu0 %v1790
        %v1792 = vpop.xlane.xlu0 %1791
        %v1793 = vsel %vm419, %v1747, 0.0
        %1794 = vadd.xlane.f32.xlu0 %v1793
        %v1795 = vpop.xlane.xlu0 %1794
        %v1796 = vsel %vm419, %v1748, 0.0
        %1797 = vadd.xlane.f32.xlu0 %v1796
        %v1798 = vpop.xlane.xlu0 %1797
        %v1799 = vsel %vm419, %v1749, 0.0
        %1800 = vadd.xlane.f32.xlu0 %v1799
        %v1801 = vpop.xlane.xlu0 %1800
        %v1802 = vsel %vm419, %v1750, 0.0
        %1803 = vadd.xlane.f32.xlu0 %v1802
        %v1804 = vpop.xlane.xlu0 %1803
        %v1805 = vsel %vm419, %v1751, 0.0
        %1806 = vadd.xlane.f32.xlu0 %v1805
        %v1807 = vpop.xlane.xlu0 %1806
        %v1808 = vsel %vm419, %v1752, 0.0
        %1809 = vadd.xlane.f32.xlu0 %v1808
        %v1810 = vpop.xlane.xlu0 %1809
        %v1811 = vsel %vm419, %v1753, 0.0
        %1812 = vadd.xlane.f32.xlu0 %v1811
        %v1813 = vpop.xlane.xlu0 %1812
        %v1814 = vsel %vm419, %v1754, 0.0
        %1815 = vadd.xlane.f32.xlu0 %v1814
        %v1816 = vpop.xlane.xlu0 %1815
        %v1817 = vsel %vm419, %v1755, 0.0
        %1818 = vadd.xlane.f32.xlu0 %v1817
        %v1819 = vpop.xlane.xlu0 %1818
        %v1820 = vsel %vm419, %v1756, 0.0
        %1821 = vadd.xlane.f32.xlu0 %v1820
        %v1822 = vpop.xlane.xlu0 %1821
        %v1823 = vsel %vm419, %v1757, 0.0
        %1824 = vadd.xlane.f32.xlu0 %v1823
        %v1825 = vpop.xlane.xlu0 %1824
        %v1826 = vsel %vm419, %v1758, 0.0
        %1827 = vadd.xlane.f32.xlu0 %v1826
        %v1828 = vpop.xlane.xlu0 %1827
        %v1829 = vsel %vm419, %v1759, 0.0
        %1830 = vadd.xlane.f32.xlu0 %v1829
        %v1831 = vpop.xlane.xlu0 %1830
        %v1832 = vsel %vm419, %v1760, 0.0
        %1833 = vadd.xlane.f32.xlu0 %v1832
        %v1834 = vpop.xlane.xlu0 %1833
        %v1835 = vsel %vm419, %v1761, 0.0
        %1836 = vadd.xlane.f32.xlu0 %v1835
        %v1837 = vpop.xlane.xlu0 %1836
        %v1838 = vsel %vm419, %v1762, 0.0
        %1839 = vadd.xlane.f32.xlu0 %v1838
        %v1840 = vpop.xlane.xlu0 %1839
        %v1841 = vsel %vm419, %v1763, 0.0
        %1842 = vadd.xlane.f32.xlu0 %v1841
        %v1843 = vpop.xlane.xlu0 %1842
        %v1844 = vsel %vm419, %v1764, 0.0
        %1845 = vadd.xlane.f32.xlu0 %v1844
        %v1846 = vpop.xlane.xlu0 %1845
        %v1847 = vsel %vm419, %v1765, 0.0
        %1848 = vadd.xlane.f32.xlu0 %v1847
        %v1849 = vpop.xlane.xlu0 %1848
        %v1850 = vsel %vm419, %v1766, 0.0
        %1851 = vadd.xlane.f32.xlu0 %v1850
        %v1852 = vpop.xlane.xlu0 %1851
        %v1853 = vsel %vm419, %v1767, 0.0
        %1854 = vadd.xlane.f32.xlu0 %v1853
        %v1855 = vpop.xlane.xlu0 %1854
        %v1856 = vsel %vm419, %v1768, 0.0
        %1857 = vadd.xlane.f32.xlu0 %v1856
        %v1858 = vpop.xlane.xlu0 %1857
        %v1859 = vsel %vm419, %v1769, 0.0
        %1860 = vadd.xlane.f32.xlu0 %v1859
        %v1861 = vpop.xlane.xlu0 %1860
        %v1862 = vsel %vm419, %v1770, 0.0
        %1863 = vadd.xlane.f32.xlu0 %v1862
        %v1864 = vpop.xlane.xlu0 %1863
        %v1865 = vsel %vm419, %v1771, 0.0
        %1866 = vadd.xlane.f32.xlu0 %v1865
        %v1867 = vpop.xlane.xlu0 %1866
        %v1868 = vmul.f32 %v503, 1.442695
        %v1869 = vpow.pop %v1868
        %v1870 = vmul.f32 %v506, 1.442695
        %v1871 = vpow.pop %v1870
        %v1872 = vmul.f32 %v511, 1.442695
        %v1873 = vpow.pop %v1872
        %v1874 = vmul.f32 %v514, 1.442695
        %v1875 = vpow.pop %v1874
        %v1876 = vmul.f32 %v519, 1.442695
        %v1877 = vpow.pop %v1876
        %v1878 = vmul.f32 %v522, 1.442695
        %v1879 = vpow.pop %v1878
        %v1880 = vmul.f32 %v527, 1.442695
        %v1881 = vpow.pop %v1880
        %v1882 = vmul.f32 %v530, 1.442695
        %v1883 = vpow.pop %v1882
        %v1884 = vmul.f32 %v535, 1.442695
        %v1885 = vpow.pop %v1884
        %v1886 = vmul.f32 %v538, 1.442695
        %v1887 = vpow.pop %v1886
        %v1888 = vmul.f32 %v543, 1.442695
        %v1889 = vpow.pop %v1888
        %v1890 = vmul.f32 %v546, 1.442695
        %v1891 = vpow.pop %v1890
        %v1892 = vmul.f32 %v551, 1.442695
        %v1893 = vpow.pop %v1892
        %v1894 = vmul.f32 %v554, 1.442695
        %v1895 = vpow.pop %v1894
        %v1896 = vmul.f32 %v559, 1.442695
        %v1897 = vpow.pop %v1896
        %v1898 = vmul.f32 %v562, 1.442695
        %v1899 = vpow.pop %v1898
        %v1900 = vmul.f32 %v567, 1.442695
        %v1901 = vpow.pop %v1900
        %v1902 = vmul.f32 %v570, 1.442695
        %v1903 = vpow.pop %v1902
        %v1904 = vmul.f32 %v575, 1.442695
        %v1905 = vpow.pop %v1904
        %v1906 = vmul.f32 %v578, 1.442695
        %v1907 = vpow.pop %v1906
        %v1908 = vmul.f32 %v583, 1.442695
        %v1909 = vpow.pop %v1908
        %v1910 = vmul.f32 %v586, 1.442695
        %v1911 = vpow.pop %v1910
        %v1912 = vmul.f32 %v591, 1.442695
        %v1913 = vpow.pop %v1912
        %v1914 = vmul.f32 %v594, 1.442695
        %v1915 = vpow.pop %v1914
        %v1916 = vmul.f32 %v599, 1.442695
        %v1917 = vpow.pop %v1916
        %v1918 = vmul.f32 %v602, 1.442695
        %v1919 = vpow.pop %v1918
        %v1920 = vmul.f32 %v607, 1.442695
        %v1921 = vpow.pop %v1920
        %v1922 = vmul.f32 %v610, 1.442695
        %v1923 = vpow.pop %v1922
        %v1924 = vmul.f32 %v615, 1.442695
        %v1925 = vpow.pop %v1924
        %v1926 = vmul.f32 %v618, 1.442695
        %v1927 = vpow.pop %v1926
        %v1928 = vmul.f32 %v623, 1.442695
        %v1929 = vpow.pop %v1928
        %v1930 = vmul.f32 %v626, 1.442695
        %v1931 = vpow.pop %v1930
        %v1932 = vadd.f32 %v503, 1.0
        %v1933 = vadd.f32 %v506, 1.0
        %v1934 = vadd.f32 %v511, 1.0
        %v1935 = vadd.f32 %v514, 1.0
        %v1936 = vadd.f32 %v519, 1.0
        %v1937 = vadd.f32 %v522, 1.0
        %v1938 = vadd.f32 %v527, 1.0
        %v1939 = vadd.f32 %v530, 1.0
        %v1940 = vadd.f32 %v535, 1.0
        %v1941 = vadd.f32 %v538, 1.0
        %v1942 = vadd.f32 %v543, 1.0
        %v1943 = vadd.f32 %v546, 1.0
        %v1944 = vadd.f32 %v551, 1.0
        %v1945 = vadd.f32 %v554, 1.0
        %v1946 = vadd.f32 %v559, 1.0
        %v1947 = vadd.f32 %v562, 1.0
        %v1948 = vadd.f32 %v567, 1.0
        %v1949 = vadd.f32 %v570, 1.0
        %v1950 = vadd.f32 %v575, 1.0
        %v1951 = vadd.f32 %v578, 1.0
        %v1952 = vadd.f32 %v583, 1.0
        %v1953 = vadd.f32 %v586, 1.0
        %v1954 = vadd.f32 %v591, 1.0
        %v1955 = vadd.f32 %v594, 1.0
        %v1956 = vadd.f32 %v599, 1.0
        %v1957 = vadd.f32 %v602, 1.0
        %v1958 = vadd.f32 %v607, 1.0
        %v1959 = vadd.f32 %v610, 1.0
        %v1960 = vadd.f32 %v615, 1.0
        %v1961 = vadd.f32 %v618, 1.0
        %v1962 = vadd.f32 %v623, 1.0
        %v1963 = vadd.f32 %v626, 1.0
        %v1964 = vmul.f32 %v503, %v503
        %v1965 = vmul.f32 %v506, %v506
        %v1966 = vmul.f32 %v511, %v511
        %v1967 = vmul.f32 %v514, %v514
        %v1968 = vmul.f32 %v519, %v519
        %v1969 = vmul.f32 %v522, %v522
        %v1970 = vmul.f32 %v527, %v527
        %v1971 = vmul.f32 %v530, %v530
        %v1972 = vmul.f32 %v535, %v535
        %v1973 = vmul.f32 %v538, %v538
        %v1974 = vmul.f32 %v543, %v543
        %v1975 = vmul.f32 %v546, %v546
        %v1976 = vmul.f32 %v551, %v551
        %v1977 = vmul.f32 %v554, %v554
        %v1978 = vmul.f32 %v559, %v559
        %v1979 = vmul.f32 %v562, %v562
        %v1980 = vmul.f32 %v567, %v567
        %v1981 = vmul.f32 %v570, %v570
        %v1982 = vmul.f32 %v575, %v575
        %v1983 = vmul.f32 %v578, %v578
        %v1984 = vmul.f32 %v583, %v583
        %v1985 = vmul.f32 %v586, %v586
        %v1986 = vmul.f32 %v591, %v591
        %v1987 = vmul.f32 %v594, %v594
        %v1988 = vmul.f32 %v599, %v599
        %v1989 = vmul.f32 %v602, %v602
        %v1990 = vmul.f32 %v607, %v607
        %v1991 = vmul.f32 %v610, %v610
        %v1992 = vmul.f32 %v615, %v615
        %v1993 = vmul.f32 %v618, %v618
        %v1994 = vmul.f32 %v623, %v623
        %v1995 = vmul.f32 %v626, %v626
        %2028 = vrot.lane.b32.xlu0 %v1964, 16
        %v2029 = vpop.permute.xlu0 %2028
        %2030 = vrot.lane.b32.xlu0 %v1965, 16
        %v2031 = vpop.permute.xlu0 %2030
        %2032 = vrot.lane.b32.xlu0 %v1966, 16
        %v2033 = vpop.permute.xlu0 %2032
        %2034 = vrot.lane.b32.xlu0 %v1967, 16
        %v2035 = vpop.permute.xlu0 %2034
        %2036 = vrot.lane.b32.xlu0 %v1968, 16
        %v2037 = vpop.permute.xlu0 %2036
        %2038 = vrot.lane.b32.xlu0 %v1969, 16
        %v2039 = vpop.permute.xlu0 %2038
        %2040 = vrot.lane.b32.xlu0 %v1970, 16
        %v2041 = vpop.permute.xlu0 %2040
        %2042 = vrot.lane.b32.xlu0 %v1971, 16
        %v2043 = vpop.permute.xlu0 %2042
        %2044 = vrot.lane.b32.xlu0 %v1972, 16
        %v2045 = vpop.permute.xlu0 %2044
        %2046 = vrot.lane.b32.xlu0 %v1973, 16
        %v2047 = vpop.permute.xlu0 %2046
        %2048 = vrot.lane.b32.xlu0 %v1974, 16
        %v2049 = vpop.permute.xlu0 %2048
        %2050 = vrot.lane.b32.xlu0 %v1975, 16
        %v2051 = vpop.permute.xlu0 %2050
        %2052 = vrot.lane.b32.xlu0 %v1976, 16
        %v2053 = vpop.permute.xlu0 %2052
        %2054 = vrot.lane.b32.xlu0 %v1977, 16
        %v2055 = vpop.permute.xlu0 %2054
        %2056 = vrot.lane.b32.xlu0 %v1978, 16
        %v2057 = vpop.permute.xlu0 %2056
        %2058 = vrot.lane.b32.xlu0 %v1979, 16
        %v2059 = vpop.permute.xlu0 %2058
        %2060 = vrot.lane.b32.xlu0 %v1980, 16
        %v2061 = vpop.permute.xlu0 %2060
        %2062 = vrot.lane.b32.xlu0 %v1981, 16
        %v2063 = vpop.permute.xlu0 %2062
        %2064 = vrot.lane.b32.xlu0 %v1982, 16
        %v2065 = vpop.permute.xlu0 %2064
        %2066 = vrot.lane.b32.xlu0 %v1983, 16
        %v2067 = vpop.permute.xlu0 %2066
        %2068 = vrot.lane.b32.xlu0 %v1984, 16
        %v2069 = vpop.permute.xlu0 %2068
        %2070 = vrot.lane.b32.xlu0 %v1985, 16
        %v2071 = vpop.permute.xlu0 %2070
        %2072 = vrot.lane.b32.xlu0 %v1986, 16
        %v2073 = vpop.permute.xlu0 %2072
        %2074 = vrot.lane.b32.xlu0 %v1987, 16
        %v2075 = vpop.permute.xlu0 %2074
        %2076 = vrot.lane.b32.xlu0 %v1988, 16
        %v2077 = vpop.permute.xlu0 %2076
        %2078 = vrot.lane.b32.xlu0 %v1989, 16
        %v2079 = vpop.permute.xlu0 %2078
        %2080 = vrot.lane.b32.xlu0 %v1990, 16
        %v2081 = vpop.permute.xlu0 %2080
        %2082 = vrot.lane.b32.xlu0 %v1991, 16
        %v2083 = vpop.permute.xlu0 %2082
        %2084 = vrot.lane.b32.xlu0 %v1992, 16
        %v2085 = vpop.permute.xlu0 %2084
        %2086 = vrot.lane.b32.xlu0 %v1993, 16
        %v2087 = vpop.permute.xlu0 %2086
        %2088 = vrot.lane.b32.xlu0 %v1994, 16
        %v2089 = vpop.permute.xlu0 %2088
        %2090 = vrot.lane.b32.xlu0 %v1995, 16
        %v2091 = vpop.permute.xlu0 %2090
        %v2124 = vsub.f32 %v1932, %v2029
        %v2125 = vsub.f32 %v1933, %v2031
        %v2126 = vsub.f32 %v1934, %v2033
        %v2127 = vsub.f32 %v1935, %v2035
        %v2128 = vsub.f32 %v1936, %v2037
        %v2129 = vsub.f32 %v1937, %v2039
        %v2130 = vsub.f32 %v1938, %v2041
        %v2131 = vsub.f32 %v1939, %v2043
        %v2132 = vsub.f32 %v1940, %v2045
        %v2133 = vsub.f32 %v1941, %v2047
        %v2134 = vsub.f32 %v1942, %v2049
        %v2135 = vsub.f32 %v1943, %v2051
        %v2136 = vsub.f32 %v1944, %v2053
        %v2137 = vsub.f32 %v1945, %v2055
        %v2138 = vsub.f32 %v1946, %v2057
        %v2139 = vsub.f32 %v1947, %v2059
        %v2140 = vsub.f32 %v1948, %v2061
        %v2141 = vsub.f32 %v1949, %v2063
        %v2142 = vsub.f32 %v1950, %v2065
        %v2143 = vsub.f32 %v1951, %v2067
        %v2144 = vsub.f32 %v1952, %v2069
        %v2145 = vsub.f32 %v1953, %v2071
        %v2146 = vsub.f32 %v1954, %v2073
        %v2147 = vsub.f32 %v1955, %v2075
        %v2148 = vsub.f32 %v1956, %v2077
        %v2149 = vsub.f32 %v1957, %v2079
        %v2150 = vsub.f32 %v1958, %v2081
        %v2151 = vsub.f32 %v1959, %v2083
        %v2152 = vsub.f32 %v1960, %v2085
        %v2153 = vsub.f32 %v1961, %v2087
        %v2154 = vsub.f32 %v1962, %v2089
        %v2155 = vsub.f32 %v1963, %v2091
        %v2156 = vsub.f32 %v2124, %v1869
        %v2157 = vsub.f32 %v2125, %v1871
        %v2158 = vsub.f32 %v2126, %v1873
        %v2159 = vsub.f32 %v2127, %v1875
        %v2160 = vsub.f32 %v2128, %v1877
        %v2161 = vsub.f32 %v2129, %v1879
        %v2162 = vsub.f32 %v2130, %v1881
        %v2163 = vsub.f32 %v2131, %v1883
        %v2164 = vsub.f32 %v2132, %v1885
        %v2165 = vsub.f32 %v2133, %v1887
        %v2166 = vsub.f32 %v2134, %v1889
        %v2167 = vsub.f32 %v2135, %v1891
        %v2168 = vsub.f32 %v2136, %v1893
        %v2169 = vsub.f32 %v2137, %v1895
        %v2170 = vsub.f32 %v2138, %v1897
        %v2171 = vsub.f32 %v2139, %v1899
        %v2172 = vsub.f32 %v2140, %v1901
        %v2173 = vsub.f32 %v2141, %v1903
        %v2174 = vsub.f32 %v2142, %v1905
        %v2175 = vsub.f32 %v2143, %v1907
        %v2176 = vsub.f32 %v2144, %v1909
        %v2177 = vsub.f32 %v2145, %v1911
        %v2178 = vsub.f32 %v2146, %v1913
        %v2179 = vsub.f32 %v2147, %v1915
        %v2180 = vsub.f32 %v2148, %v1917
        %v2181 = vsub.f32 %v2149, %v1919
        %v2182 = vsub.f32 %v2150, %v1921
        %v2183 = vsub.f32 %v2151, %v1923
        %v2184 = vsub.f32 %v2152, %v1925
        %v2185 = vsub.f32 %v2153, %v1927
        %v2186 = vsub.f32 %v2154, %v1929
        %v2187 = vsub.f32 %v2155, %v1931
        %2220 = vrot.lane.b32.xlu0 %v2156, 112
        %v2221 = vpop.permute.xlu0 %2220
        %2222 = vrot.lane.b32.xlu0 %v2157, 112
        %v2223 = vpop.permute.xlu0 %2222
        %2224 = vrot.lane.b32.xlu0 %v2158, 112
        %v2225 = vpop.permute.xlu0 %2224
        %2226 = vrot.lane.b32.xlu0 %v2159, 112
        %v2227 = vpop.permute.xlu0 %2226
        %2228 = vrot.lane.b32.xlu0 %v2160, 112
        %v2229 = vpop.permute.xlu0 %2228
        %2230 = vrot.lane.b32.xlu0 %v2161, 112
        %v2231 = vpop.permute.xlu0 %2230
        %2232 = vrot.lane.b32.xlu0 %v2162, 112
        %v2233 = vpop.permute.xlu0 %2232
        %2234 = vrot.lane.b32.xlu0 %v2163, 112
        %v2235 = vpop.permute.xlu0 %2234
        %2236 = vrot.lane.b32.xlu0 %v2164, 112
        %v2237 = vpop.permute.xlu0 %2236
        %2238 = vrot.lane.b32.xlu0 %v2165, 112
        %v2239 = vpop.permute.xlu0 %2238
        %2240 = vrot.lane.b32.xlu0 %v2166, 112
        %v2241 = vpop.permute.xlu0 %2240
        %2242 = vrot.lane.b32.xlu0 %v2167, 112
        %v2243 = vpop.permute.xlu0 %2242
        %2244 = vrot.lane.b32.xlu0 %v2168, 112
        %v2245 = vpop.permute.xlu0 %2244
        %2246 = vrot.lane.b32.xlu0 %v2169, 112
        %v2247 = vpop.permute.xlu0 %2246
        %2248 = vrot.lane.b32.xlu0 %v2170, 112
        %v2249 = vpop.permute.xlu0 %2248
        %2250 = vrot.lane.b32.xlu0 %v2171, 112
        %v2251 = vpop.permute.xlu0 %2250
        %2252 = vrot.lane.b32.xlu0 %v2172, 112
        %v2253 = vpop.permute.xlu0 %2252
        %2254 = vrot.lane.b32.xlu0 %v2173, 112
        %v2255 = vpop.permute.xlu0 %2254
        %2256 = vrot.lane.b32.xlu0 %v2174, 112
        %v2257 = vpop.permute.xlu0 %2256
        %2258 = vrot.lane.b32.xlu0 %v2175, 112
        %v2259 = vpop.permute.xlu0 %2258
        %2260 = vrot.lane.b32.xlu0 %v2176, 112
        %v2261 = vpop.permute.xlu0 %2260
        %2262 = vrot.lane.b32.xlu0 %v2177, 112
        %v2263 = vpop.permute.xlu0 %2262
        %2264 = vrot.lane.b32.xlu0 %v2178, 112
        %v2265 = vpop.permute.xlu0 %2264
        %2266 = vrot.lane.b32.xlu0 %v2179, 112
        %v2267 = vpop.permute.xlu0 %2266
        %2268 = vrot.lane.b32.xlu0 %v2180, 112
        %v2269 = vpop.permute.xlu0 %2268
        %2270 = vrot.lane.b32.xlu0 %v2181, 112
        %v2271 = vpop.permute.xlu0 %2270
        %2272 = vrot.lane.b32.xlu0 %v2182, 112
        %v2273 = vpop.permute.xlu0 %2272
        %2274 = vrot.lane.b32.xlu0 %v2183, 112
        %v2275 = vpop.permute.xlu0 %2274
        %2276 = vrot.lane.b32.xlu0 %v2184, 112
        %v2277 = vpop.permute.xlu0 %2276
        %2278 = vrot.lane.b32.xlu0 %v2185, 112
        %v2279 = vpop.permute.xlu0 %2278
        %2280 = vrot.lane.b32.xlu0 %v2186, 112
        %v2281 = vpop.permute.xlu0 %2280
        %2282 = vrot.lane.b32.xlu0 %v2187, 112
        %v2283 = vpop.permute.xlu0 %2282
        %v2316 = vsel %vm948, %v2221, 0.0
        %2317 = vadd.xlane.f32.xlu0 %v2316
        %v2318 = vpop.xlane.xlu0 %2317
        %v2319 = vsel %vm948, %v2223, 0.0
        %2320 = vadd.xlane.f32.xlu0 %v2319
        %v2321 = vpop.xlane.xlu0 %2320
        %v2322 = vsel %vm948, %v2225, 0.0
        %2323 = vadd.xlane.f32.xlu0 %v2322
        %v2324 = vpop.xlane.xlu0 %2323
        %v2325 = vsel %vm948, %v2227, 0.0
        %2326 = vadd.xlane.f32.xlu0 %v2325
        %v2327 = vpop.xlane.xlu0 %2326
        %v2328 = vsel %vm948, %v2229, 0.0
        %2329 = vadd.xlane.f32.xlu0 %v2328
        %v2330 = vpop.xlane.xlu0 %2329
        %v2331 = vsel %vm948, %v2231, 0.0
        %2332 = vadd.xlane.f32.xlu0 %v2331
        %v2333 = vpop.xlane.xlu0 %2332
        %v2334 = vsel %vm948, %v2233, 0.0
        %2335 = vadd.xlane.f32.xlu0 %v2334
        %v2336 = vpop.xlane.xlu0 %2335
        %v2337 = vsel %vm948, %v2235, 0.0
        %2338 = vadd.xlane.f32.xlu0 %v2337
        %v2339 = vpop.xlane.xlu0 %2338
        %v2340 = vsel %vm948, %v2237, 0.0
        %2341 = vadd.xlane.f32.xlu0 %v2340
        %v2342 = vpop.xlane.xlu0 %2341
        %v2343 = vsel %vm948, %v2239, 0.0
        %2344 = vadd.xlane.f32.xlu0 %v2343
        %v2345 = vpop.xlane.xlu0 %2344
        %v2346 = vsel %vm948, %v2241, 0.0
        %2347 = vadd.xlane.f32.xlu0 %v2346
        %v2348 = vpop.xlane.xlu0 %2347
        %v2349 = vsel %vm948, %v2243, 0.0
        %2350 = vadd.xlane.f32.xlu0 %v2349
        %v2351 = vpop.xlane.xlu0 %2350
        %v2352 = vsel %vm948, %v2245, 0.0
        %2353 = vadd.xlane.f32.xlu0 %v2352
        %v2354 = vpop.xlane.xlu0 %2353
        %v2355 = vsel %vm948, %v2247, 0.0
        %2356 = vadd.xlane.f32.xlu0 %v2355
        %v2357 = vpop.xlane.xlu0 %2356
        %v2358 = vsel %vm948, %v2249, 0.0
        %2359 = vadd.xlane.f32.xlu0 %v2358
        %v2360 = vpop.xlane.xlu0 %2359
        %v2361 = vsel %vm948, %v2251, 0.0
        %2362 = vadd.xlane.f32.xlu0 %v2361
        %v2363 = vpop.xlane.xlu0 %2362
        %v2364 = vsel %vm948, %v2253, 0.0
        %2365 = vadd.xlane.f32.xlu0 %v2364
        %v2366 = vpop.xlane.xlu0 %2365
        %v2367 = vsel %vm948, %v2255, 0.0
        %2368 = vadd.xlane.f32.xlu0 %v2367
        %v2369 = vpop.xlane.xlu0 %2368
        %v2370 = vsel %vm948, %v2257, 0.0
        %2371 = vadd.xlane.f32.xlu0 %v2370
        %v2372 = vpop.xlane.xlu0 %2371
        %v2373 = vsel %vm948, %v2259, 0.0
        %2374 = vadd.xlane.f32.xlu0 %v2373
        %v2375 = vpop.xlane.xlu0 %2374
        %v2376 = vsel %vm948, %v2261, 0.0
        %2377 = vadd.xlane.f32.xlu0 %v2376
        %v2378 = vpop.xlane.xlu0 %2377
        %v2379 = vsel %vm948, %v2263, 0.0
        %2380 = vadd.xlane.f32.xlu0 %v2379
        %v2381 = vpop.xlane.xlu0 %2380
        %v2382 = vsel %vm948, %v2265, 0.0
        %2383 = vadd.xlane.f32.xlu0 %v2382
        %v2384 = vpop.xlane.xlu0 %2383
        %v2385 = vsel %vm948, %v2267, 0.0
        %2386 = vadd.xlane.f32.xlu0 %v2385
        %v2387 = vpop.xlane.xlu0 %2386
        %v2388 = vsel %vm948, %v2269, 0.0
        %2389 = vadd.xlane.f32.xlu0 %v2388
        %v2390 = vpop.xlane.xlu0 %2389
        %v2391 = vsel %vm948, %v2271, 0.0
        %2392 = vadd.xlane.f32.xlu0 %v2391
        %v2393 = vpop.xlane.xlu0 %2392
        %v2394 = vsel %vm948, %v2273, 0.0
        %2395 = vadd.xlane.f32.xlu0 %v2394
        %v2396 = vpop.xlane.xlu0 %2395
        %v2397 = vsel %vm948, %v2275, 0.0
        %2398 = vadd.xlane.f32.xlu0 %v2397
        %v2399 = vpop.xlane.xlu0 %2398
        %v2400 = vsel %vm948, %v2277, 0.0
        %2401 = vadd.xlane.f32.xlu0 %v2400
        %v2402 = vpop.xlane.xlu0 %2401
        %v2403 = vsel %vm948, %v2279, 0.0
        %2404 = vadd.xlane.f32.xlu0 %v2403
        %v2405 = vpop.xlane.xlu0 %2404
        %v2406 = vsel %vm948, %v2281, 0.0
        %2407 = vadd.xlane.f32.xlu0 %v2406
        %v2408 = vpop.xlane.xlu0 %2407
        %v2409 = vsel %vm948, %v2283, 0.0
        %2410 = vadd.xlane.f32.xlu0 %v2409
        %v2411 = vpop.xlane.xlu0 %2410
        %v2412 = vmul.f32 %v2318, -0.5
        %v2413 = vmul.f32 %v2321, -0.5
        %v2414 = vmul.f32 %v2324, -0.5
        %v2415 = vmul.f32 %v2327, -0.5
        %v2416 = vmul.f32 %v2330, -0.5
        %v2417 = vmul.f32 %v2333, -0.5
        %v2418 = vmul.f32 %v2336, -0.5
        %v2419 = vmul.f32 %v2339, -0.5
        %v2420 = vmul.f32 %v2342, -0.5
        %v2421 = vmul.f32 %v2345, -0.5
        %v2422 = vmul.f32 %v2348, -0.5
        %v2423 = vmul.f32 %v2351, -0.5
        %v2424 = vmul.f32 %v2354, -0.5
        %v2425 = vmul.f32 %v2357, -0.5
        %v2426 = vmul.f32 %v2360, -0.5
        %v2427 = vmul.f32 %v2363, -0.5
        %v2428 = vmul.f32 %v2366, -0.5
        %v2429 = vmul.f32 %v2369, -0.5
        %v2430 = vmul.f32 %v2372, -0.5
        %v2431 = vmul.f32 %v2375, -0.5
        %v2432 = vmul.f32 %v2378, -0.5
        %v2433 = vmul.f32 %v2381, -0.5
        %v2434 = vmul.f32 %v2384, -0.5
        %v2435 = vmul.f32 %v2387, -0.5
        %v2436 = vmul.f32 %v2390, -0.5
        %v2437 = vmul.f32 %v2393, -0.5
        %v2438 = vmul.f32 %v2396, -0.5
        %v2439 = vmul.f32 %v2399, -0.5
        %v2440 = vmul.f32 %v2402, -0.5
        %v2441 = vmul.f32 %v2405, -0.5
        %v2442 = vmul.f32 %v2408, -0.5
        %v2443 = vmul.f32 %v2411, -0.5
        %v2444 = vmul.f32 %v1032, %v316
        %v2445 = vmul.f32 %v1035, %v317
        %v2446 = vmul.f32 %v1040, %v318
        %v2447 = vmul.f32 %v1043, %v319
        %v2448 = vmul.f32 %v1048, %v320
        %v2449 = vmul.f32 %v1051, %v321
        %v2450 = vmul.f32 %v1056, %v322
        %v2451 = vmul.f32 %v1059, %v323
        %v2452 = vmul.f32 %v1064, %v324
        %v2453 = vmul.f32 %v1067, %v325
        %v2454 = vmul.f32 %v1072, %v326
        %v2455 = vmul.f32 %v1075, %v327
        %v2456 = vmul.f32 %v1080, %v328
        %v2457 = vmul.f32 %v1083, %v329
        %v2458 = vmul.f32 %v1088, %v330
        %v2459 = vmul.f32 %v1091, %v331
        %v2460 = vmul.f32 %v1096, %v332
        %v2461 = vmul.f32 %v1099, %v333
        %v2462 = vmul.f32 %v1104, %v334
        %v2463 = vmul.f32 %v1107, %v335
        %v2464 = vmul.f32 %v1112, %v336
        %v2465 = vmul.f32 %v1115, %v337
        %v2466 = vmul.f32 %v1120, %v338
        %v2467 = vmul.f32 %v1123, %v339
        %v2468 = vmul.f32 %v1128, %v340
        %v2469 = vmul.f32 %v1131, %v341
        %v2470 = vmul.f32 %v1136, %v342
        %v2471 = vmul.f32 %v1139, %v343
        %v2472 = vmul.f32 %v1144, %v344
        %v2473 = vmul.f32 %v1147, %v345
        %v2474 = vmul.f32 %v1152, %v346
        %v2475 = vmul.f32 %v1155, %v347
        %v2476 = vsel %vm419, %v2444, 0.0
        %2477 = vadd.xlane.f32.xlu0 %v2476
        %v2478 = vpop.xlane.xlu0 %2477
        %v2479 = vsel %vm419, %v2445, 0.0
        %2480 = vadd.xlane.f32.xlu0 %v2479
        %v2481 = vpop.xlane.xlu0 %2480
        %v2482 = vsel %vm419, %v2446, 0.0
        %2483 = vadd.xlane.f32.xlu0 %v2482
        %v2484 = vpop.xlane.xlu0 %2483
        %v2485 = vsel %vm419, %v2447, 0.0
        %2486 = vadd.xlane.f32.xlu0 %v2485
        %v2487 = vpop.xlane.xlu0 %2486
        %v2488 = vsel %vm419, %v2448, 0.0
        %2489 = vadd.xlane.f32.xlu0 %v2488
        %v2490 = vpop.xlane.xlu0 %2489
        %v2491 = vsel %vm419, %v2449, 0.0
        %2492 = vadd.xlane.f32.xlu0 %v2491
        %v2493 = vpop.xlane.xlu0 %2492
        %v2494 = vsel %vm419, %v2450, 0.0
        %2495 = vadd.xlane.f32.xlu0 %v2494
        %v2496 = vpop.xlane.xlu0 %2495
        %v2497 = vsel %vm419, %v2451, 0.0
        %2498 = vadd.xlane.f32.xlu0 %v2497
        %v2499 = vpop.xlane.xlu0 %2498
        %v2500 = vsel %vm419, %v2452, 0.0
        %2501 = vadd.xlane.f32.xlu0 %v2500
        %v2502 = vpop.xlane.xlu0 %2501
        %v2503 = vsel %vm419, %v2453, 0.0
        %2504 = vadd.xlane.f32.xlu0 %v2503
        %v2505 = vpop.xlane.xlu0 %2504
        %v2506 = vsel %vm419, %v2454, 0.0
        %2507 = vadd.xlane.f32.xlu0 %v2506
        %v2508 = vpop.xlane.xlu0 %2507
        %v2509 = vsel %vm419, %v2455, 0.0
        %2510 = vadd.xlane.f32.xlu0 %v2509
        %v2511 = vpop.xlane.xlu0 %2510
        %v2512 = vsel %vm419, %v2456, 0.0
        %2513 = vadd.xlane.f32.xlu0 %v2512
        %v2514 = vpop.xlane.xlu0 %2513
        %v2515 = vsel %vm419, %v2457, 0.0
        %2516 = vadd.xlane.f32.xlu0 %v2515
        %v2517 = vpop.xlane.xlu0 %2516
        %v2518 = vsel %vm419, %v2458, 0.0
        %2519 = vadd.xlane.f32.xlu0 %v2518
        %v2520 = vpop.xlane.xlu0 %2519
        %v2521 = vsel %vm419, %v2459, 0.0
        %2522 = vadd.xlane.f32.xlu0 %v2521
        %v2523 = vpop.xlane.xlu0 %2522
        %v2524 = vsel %vm419, %v2460, 0.0
        %2525 = vadd.xlane.f32.xlu0 %v2524
        %v2526 = vpop.xlane.xlu0 %2525
        %v2527 = vsel %vm419, %v2461, 0.0
        %2528 = vadd.xlane.f32.xlu0 %v2527
        %v2529 = vpop.xlane.xlu0 %2528
        %v2530 = vsel %vm419, %v2462, 0.0
        %2531 = vadd.xlane.f32.xlu0 %v2530
        %v2532 = vpop.xlane.xlu0 %2531
        %v2533 = vsel %vm419, %v2463, 0.0
        %2534 = vadd.xlane.f32.xlu0 %v2533
        %v2535 = vpop.xlane.xlu0 %2534
        %v2536 = vsel %vm419, %v2464, 0.0
        %2537 = vadd.xlane.f32.xlu0 %v2536
        %v2538 = vpop.xlane.xlu0 %2537
        %v2539 = vsel %vm419, %v2465, 0.0
        %2540 = vadd.xlane.f32.xlu0 %v2539
        %v2541 = vpop.xlane.xlu0 %2540
        %v2542 = vsel %vm419, %v2466, 0.0
        %2543 = vadd.xlane.f32.xlu0 %v2542
        %v2544 = vpop.xlane.xlu0 %2543
        %v2545 = vsel %vm419, %v2467, 0.0
        %2546 = vadd.xlane.f32.xlu0 %v2545
        %v2547 = vpop.xlane.xlu0 %2546
        %v2548 = vsel %vm419, %v2468, 0.0
        %2549 = vadd.xlane.f32.xlu0 %v2548
        %v2550 = vpop.xlane.xlu0 %2549
        %v2551 = vsel %vm419, %v2469, 0.0
        %2552 = vadd.xlane.f32.xlu0 %v2551
        %v2553 = vpop.xlane.xlu0 %2552
        %v2554 = vsel %vm419, %v2470, 0.0
        %2555 = vadd.xlane.f32.xlu0 %v2554
        %v2556 = vpop.xlane.xlu0 %2555
        %v2557 = vsel %vm419, %v2471, 0.0
        %2558 = vadd.xlane.f32.xlu0 %v2557
        %v2559 = vpop.xlane.xlu0 %2558
        %v2560 = vsel %vm419, %v2472, 0.0
        %2561 = vadd.xlane.f32.xlu0 %v2560
        %v2562 = vpop.xlane.xlu0 %2561
        %v2563 = vsel %vm419, %v2473, 0.0
        %2564 = vadd.xlane.f32.xlu0 %v2563
        %v2565 = vpop.xlane.xlu0 %2564
        %v2566 = vsel %vm419, %v2474, 0.0
        %2567 = vadd.xlane.f32.xlu0 %v2566
        %v2568 = vpop.xlane.xlu0 %2567
        %v2569 = vsel %vm419, %v2475, 0.0
        %2570 = vadd.xlane.f32.xlu0 %v2569
        %v2571 = vpop.xlane.xlu0 %2570
        %v2572 = vsub.f32 1.0, %v2478
        %v2573 = vsub.f32 1.0, %v2481
        %v2574 = vsub.f32 1.0, %v2484
        %v2575 = vsub.f32 1.0, %v2487
        %v2576 = vsub.f32 1.0, %v2490
        %v2577 = vsub.f32 1.0, %v2493
        %v2578 = vsub.f32 1.0, %v2496
        %v2579 = vsub.f32 1.0, %v2499
        %v2580 = vsub.f32 1.0, %v2502
        %v2581 = vsub.f32 1.0, %v2505
        %v2582 = vsub.f32 1.0, %v2508
        %v2583 = vsub.f32 1.0, %v2511
        %v2584 = vsub.f32 1.0, %v2514
        %v2585 = vsub.f32 1.0, %v2517
        %v2586 = vsub.f32 1.0, %v2520
        %v2587 = vsub.f32 1.0, %v2523
        %v2588 = vsub.f32 1.0, %v2526
        %v2589 = vsub.f32 1.0, %v2529
        %v2590 = vsub.f32 1.0, %v2532
        %v2591 = vsub.f32 1.0, %v2535
        %v2592 = vsub.f32 1.0, %v2538
        %v2593 = vsub.f32 1.0, %v2541
        %v2594 = vsub.f32 1.0, %v2544
        %v2595 = vsub.f32 1.0, %v2547
        %v2596 = vsub.f32 1.0, %v2550
        %v2597 = vsub.f32 1.0, %v2553
        %v2598 = vsub.f32 1.0, %v2556
        %v2599 = vsub.f32 1.0, %v2559
        %v2600 = vsub.f32 1.0, %v2562
        %v2601 = vsub.f32 1.0, %v2565
        %v2602 = vsub.f32 1.0, %v2568
        %v2603 = vsub.f32 1.0, %v2571
        %v2604 = vmul.f32 %v1774, %v1676
        %v2605 = vmul.f32 %v1777, %v1677
        %v2606 = vmul.f32 %v1780, %v1678
        %v2607 = vmul.f32 %v1783, %v1679
        %v2608 = vmul.f32 %v1786, %v1680
        %v2609 = vmul.f32 %v1789, %v1681
        %v2610 = vmul.f32 %v1792, %v1682
        %v2611 = vmul.f32 %v1795, %v1683
        %v2612 = vmul.f32 %v1798, %v1684
        %v2613 = vmul.f32 %v1801, %v1685
        %v2614 = vmul.f32 %v1804, %v1686
        %v2615 = vmul.f32 %v1807, %v1687
        %v2616 = vmul.f32 %v1810, %v1688
        %v2617 = vmul.f32 %v1813, %v1689
        %v2618 = vmul.f32 %v1816, %v1690
        %v2619 = vmul.f32 %v1819, %v1691
        %v2620 = vmul.f32 %v1822, %v1692
        %v2621 = vmul.f32 %v1825, %v1693
        %v2622 = vmul.f32 %v1828, %v1694
        %v2623 = vmul.f32 %v1831, %v1695
        %v2624 = vmul.f32 %v1834, %v1696
        %v2625 = vmul.f32 %v1837, %v1697
        %v2626 = vmul.f32 %v1840, %v1698
        %v2627 = vmul.f32 %v1843, %v1699
        %v2628 = vmul.f32 %v1846, %v1700
        %v2629 = vmul.f32 %v1849, %v1701
        %v2630 = vmul.f32 %v1852, %v1702
        %v2631 = vmul.f32 %v1855, %v1703
        %v2632 = vmul.f32 %v1858, %v1704
        %v2633 = vmul.f32 %v1861, %v1705
        %v2634 = vmul.f32 %v1864, %v1706
        %v2635 = vmul.f32 %v1867, %v1707
        %vm2636 = vcmask 7168
        %v2637 = vsel %vm2636, %v2604, 0.0
        %v2638 = vsel %vm2636, %v2605, 0.0
        %v2639 = vadd.f32 %v2637, %v2638
        %v2640 = vsel %vm2636, %v2606, 0.0
        %v2641 = vadd.f32 %v2639, %v2640
        %v2642 = vsel %vm2636, %v2607, 0.0
        %v2643 = vadd.f32 %v2641, %v2642
        %v2644 = vsel %vm2636, %v2608, 0.0
        %v2645 = vadd.f32 %v2643, %v2644
        %v2646 = vsel %vm2636, %v2609, 0.0
        %v2647 = vadd.f32 %v2645, %v2646
        %v2648 = vsel %vm2636, %v2610, 0.0
        %v2649 = vadd.f32 %v2647, %v2648
        %v2650 = vsel %vm2636, %v2611, 0.0
        %v2651 = vadd.f32 %v2649, %v2650
        %v2652 = vsel %vm2636, %v2612, 0.0
        %v2653 = vadd.f32 %v2651, %v2652
        %v2654 = vsel %vm2636, %v2613, 0.0
        %v2655 = vadd.f32 %v2653, %v2654
        %v2656 = vsel %vm2636, %v2614, 0.0
        %v2657 = vadd.f32 %v2655, %v2656
        %v2658 = vsel %vm2636, %v2615, 0.0
        %v2659 = vadd.f32 %v2657, %v2658
        %v2660 = vsel %vm2636, %v2616, 0.0
        %v2661 = vadd.f32 %v2659, %v2660
        %v2662 = vsel %vm2636, %v2617, 0.0
        %v2663 = vadd.f32 %v2661, %v2662
        %v2664 = vsel %vm2636, %v2618, 0.0
        %v2665 = vadd.f32 %v2663, %v2664
        %v2666 = vsel %vm2636, %v2619, 0.0
        %v2667 = vadd.f32 %v2665, %v2666
        %v2668 = vsel %vm2636, %v2620, 0.0
        %v2669 = vadd.f32 %v2667, %v2668
        %v2670 = vsel %vm2636, %v2621, 0.0
        %v2671 = vadd.f32 %v2669, %v2670
        %v2672 = vsel %vm2636, %v2622, 0.0
        %v2673 = vadd.f32 %v2671, %v2672
        %v2674 = vsel %vm2636, %v2623, 0.0
        %v2675 = vadd.f32 %v2673, %v2674
        %v2676 = vsel %vm2636, %v2624, 0.0
        %v2677 = vadd.f32 %v2675, %v2676
        %v2678 = vsel %vm2636, %v2625, 0.0
        %v2679 = vadd.f32 %v2677, %v2678
        %v2680 = vsel %vm2636, %v2626, 0.0
        %v2681 = vadd.f32 %v2679, %v2680
        %v2682 = vsel %vm2636, %v2627, 0.0
        %v2683 = vadd.f32 %v2681, %v2682
        %v2684 = vsel %vm2636, %v2628, 0.0
        %v2685 = vadd.f32 %v2683, %v2684
        %v2686 = vsel %vm2636, %v2629, 0.0
        %v2687 = vadd.f32 %v2685, %v2686
        %v2688 = vsel %vm2636, %v2630, 0.0
        %v2689 = vadd.f32 %v2687, %v2688
        %v2690 = vsel %vm2636, %v2631, 0.0
        %v2691 = vadd.f32 %v2689, %v2690
        %v2692 = vsel %vm2636, %v2632, 0.0
        %v2693 = vadd.f32 %v2691, %v2692
        %v2694 = vsel %vm2636, %v2633, 0.0
        %v2695 = vadd.f32 %v2693, %v2694
        %v2696 = vsel %vm2636, %v2634, 0.0
        %v2697 = vadd.f32 %v2695, %v2696
        %v2698 = vsel %vm2636, %v2635, 0.0
        %v2699 = vadd.f32 %v2697, %v2698
        %2700 = vadd.xlane.f32.xlu0 %v2699
        %v2701 = vpop.xlane.xlu0 %2700
        %v2702 = vrot.slane %v2701, 4
        %v2703 = vadd.f32 %v2701, %v2702
        %v2704 = vrot.slane %v2703, 2
        %v2705 = vadd.f32 %v2703, %v2704
        %v2706 = vrot.slane %v2705, 1
        %v2707 = vadd.f32 %v2705, %v2706
        %s2708 = vtos %v2707
        %v2709 = vmul.f32 %v2412, %v1676
        %v2710 = vmul.f32 %v2413, %v1677
        %v2711 = vmul.f32 %v2414, %v1678
        %v2712 = vmul.f32 %v2415, %v1679
        %v2713 = vmul.f32 %v2416, %v1680
        %v2714 = vmul.f32 %v2417, %v1681
        %v2715 = vmul.f32 %v2418, %v1682
        %v2716 = vmul.f32 %v2419, %v1683
        %v2717 = vmul.f32 %v2420, %v1684
        %v2718 = vmul.f32 %v2421, %v1685
        %v2719 = vmul.f32 %v2422, %v1686
        %v2720 = vmul.f32 %v2423, %v1687
        %v2721 = vmul.f32 %v2424, %v1688
        %v2722 = vmul.f32 %v2425, %v1689
        %v2723 = vmul.f32 %v2426, %v1690
        %v2724 = vmul.f32 %v2427, %v1691
        %v2725 = vmul.f32 %v2428, %v1692
        %v2726 = vmul.f32 %v2429, %v1693
        %v2727 = vmul.f32 %v2430, %v1694
        %v2728 = vmul.f32 %v2431, %v1695
        %v2729 = vmul.f32 %v2432, %v1696
        %v2730 = vmul.f32 %v2433, %v1697
        %v2731 = vmul.f32 %v2434, %v1698
        %v2732 = vmul.f32 %v2435, %v1699
        %v2733 = vmul.f32 %v2436, %v1700
        %v2734 = vmul.f32 %v2437, %v1701
        %v2735 = vmul.f32 %v2438, %v1702
        %v2736 = vmul.f32 %v2439, %v1703
        %v2737 = vmul.f32 %v2440, %v1704
        %v2738 = vmul.f32 %v2441, %v1705
        %v2739 = vmul.f32 %v2442, %v1706
        %v2740 = vmul.f32 %v2443, %v1707
        %v2741 = vsel %vm2636, %v2709, 0.0
        %v2742 = vsel %vm2636, %v2710, 0.0
        %v2743 = vadd.f32 %v2741, %v2742
        %v2744 = vsel %vm2636, %v2711, 0.0
        %v2745 = vadd.f32 %v2743, %v2744
        %v2746 = vsel %vm2636, %v2712, 0.0
        %v2747 = vadd.f32 %v2745, %v2746
        %v2748 = vsel %vm2636, %v2713, 0.0
        %v2749 = vadd.f32 %v2747, %v2748
        %v2750 = vsel %vm2636, %v2714, 0.0
        %v2751 = vadd.f32 %v2749, %v2750
        %v2752 = vsel %vm2636, %v2715, 0.0
        %v2753 = vadd.f32 %v2751, %v2752
        %v2754 = vsel %vm2636, %v2716, 0.0
        %v2755 = vadd.f32 %v2753, %v2754
        %v2756 = vsel %vm2636, %v2717, 0.0
        %v2757 = vadd.f32 %v2755, %v2756
        %v2758 = vsel %vm2636, %v2718, 0.0
        %v2759 = vadd.f32 %v2757, %v2758
        %v2760 = vsel %vm2636, %v2719, 0.0
        %v2761 = vadd.f32 %v2759, %v2760
        %v2762 = vsel %vm2636, %v2720, 0.0
        %v2763 = vadd.f32 %v2761, %v2762
        %v2764 = vsel %vm2636, %v2721, 0.0
        %v2765 = vadd.f32 %v2763, %v2764
        %v2766 = vsel %vm2636, %v2722, 0.0
        %v2767 = vadd.f32 %v2765, %v2766
        %v2768 = vsel %vm2636, %v2723, 0.0
        %v2769 = vadd.f32 %v2767, %v2768
        %v2770 = vsel %vm2636, %v2724, 0.0
        %v2771 = vadd.f32 %v2769, %v2770
        %v2772 = vsel %vm2636, %v2725, 0.0
        %v2773 = vadd.f32 %v2771, %v2772
        %v2774 = vsel %vm2636, %v2726, 0.0
        %v2775 = vadd.f32 %v2773, %v2774
        %v2776 = vsel %vm2636, %v2727, 0.0
        %v2777 = vadd.f32 %v2775, %v2776
        %v2778 = vsel %vm2636, %v2728, 0.0
        %v2779 = vadd.f32 %v2777, %v2778
        %v2780 = vsel %vm2636, %v2729, 0.0
        %v2781 = vadd.f32 %v2779, %v2780
        %v2782 = vsel %vm2636, %v2730, 0.0
        %v2783 = vadd.f32 %v2781, %v2782
        %v2784 = vsel %vm2636, %v2731, 0.0
        %v2785 = vadd.f32 %v2783, %v2784
        %v2786 = vsel %vm2636, %v2732, 0.0
        %v2787 = vadd.f32 %v2785, %v2786
        %v2788 = vsel %vm2636, %v2733, 0.0
        %v2789 = vadd.f32 %v2787, %v2788
        %v2790 = vsel %vm2636, %v2734, 0.0
        %v2791 = vadd.f32 %v2789, %v2790
        %v2792 = vsel %vm2636, %v2735, 0.0
        %v2793 = vadd.f32 %v2791, %v2792
        %v2794 = vsel %vm2636, %v2736, 0.0
        %v2795 = vadd.f32 %v2793, %v2794
        %v2796 = vsel %vm2636, %v2737, 0.0
        %v2797 = vadd.f32 %v2795, %v2796
        %v2798 = vsel %vm2636, %v2738, 0.0
        %v2799 = vadd.f32 %v2797, %v2798
        %v2800 = vsel %vm2636, %v2739, 0.0
        %v2801 = vadd.f32 %v2799, %v2800
        %v2802 = vsel %vm2636, %v2740, 0.0
        %v2803 = vadd.f32 %v2801, %v2802
        %2804 = vadd.xlane.f32.xlu0 %v2803
        %v2805 = vpop.xlane.xlu0 %2804
        %v2806 = vrot.slane %v2805, 4
        %v2807 = vadd.f32 %v2805, %v2806
        %v2808 = vrot.slane %v2807, 2
        %v2809 = vadd.f32 %v2807, %v2808
        %v2810 = vrot.slane %v2809, 1
        %v2811 = vadd.f32 %v2809, %v2810
        %s2812 = vtos %v2811
        %v2813 = vmul.f32 %v2572, %v1676
        %v2814 = vmul.f32 %v2573, %v1677
        %v2815 = vmul.f32 %v2574, %v1678
        %v2816 = vmul.f32 %v2575, %v1679
        %v2817 = vmul.f32 %v2576, %v1680
        %v2818 = vmul.f32 %v2577, %v1681
        %v2819 = vmul.f32 %v2578, %v1682
        %v2820 = vmul.f32 %v2579, %v1683
        %v2821 = vmul.f32 %v2580, %v1684
        %v2822 = vmul.f32 %v2581, %v1685
        %v2823 = vmul.f32 %v2582, %v1686
        %v2824 = vmul.f32 %v2583, %v1687
        %v2825 = vmul.f32 %v2584, %v1688
        %v2826 = vmul.f32 %v2585, %v1689
        %v2827 = vmul.f32 %v2586, %v1690
        %v2828 = vmul.f32 %v2587, %v1691
        %v2829 = vmul.f32 %v2588, %v1692
        %v2830 = vmul.f32 %v2589, %v1693
        %v2831 = vmul.f32 %v2590, %v1694
        %v2832 = vmul.f32 %v2591, %v1695
        %v2833 = vmul.f32 %v2592, %v1696
        %v2834 = vmul.f32 %v2593, %v1697
        %v2835 = vmul.f32 %v2594, %v1698
        %v2836 = vmul.f32 %v2595, %v1699
        %v2837 = vmul.f32 %v2596, %v1700
        %v2838 = vmul.f32 %v2597, %v1701
        %v2839 = vmul.f32 %v2598, %v1702
        %v2840 = vmul.f32 %v2599, %v1703
        %v2841 = vmul.f32 %v2600, %v1704
        %v2842 = vmul.f32 %v2601, %v1705
        %v2843 = vmul.f32 %v2602, %v1706
        %v2844 = vmul.f32 %v2603, %v1707
        %v2845 = vsel %vm2636, %v2813, 0.0
        %v2846 = vsel %vm2636, %v2814, 0.0
        %v2847 = vadd.f32 %v2845, %v2846
        %v2848 = vsel %vm2636, %v2815, 0.0
        %v2849 = vadd.f32 %v2847, %v2848
        %v2850 = vsel %vm2636, %v2816, 0.0
        %v2851 = vadd.f32 %v2849, %v2850
        %v2852 = vsel %vm2636, %v2817, 0.0
        %v2853 = vadd.f32 %v2851, %v2852
        %v2854 = vsel %vm2636, %v2818, 0.0
        %v2855 = vadd.f32 %v2853, %v2854
        %v2856 = vsel %vm2636, %v2819, 0.0
        %v2857 = vadd.f32 %v2855, %v2856
        %v2858 = vsel %vm2636, %v2820, 0.0
        %v2859 = vadd.f32 %v2857, %v2858
        %v2860 = vsel %vm2636, %v2821, 0.0
        %v2861 = vadd.f32 %v2859, %v2860
        %v2862 = vsel %vm2636, %v2822, 0.0
        %v2863 = vadd.f32 %v2861, %v2862
        %v2864 = vsel %vm2636, %v2823, 0.0
        %v2865 = vadd.f32 %v2863, %v2864
        %v2866 = vsel %vm2636, %v2824, 0.0
        %v2867 = vadd.f32 %v2865, %v2866
        %v2868 = vsel %vm2636, %v2825, 0.0
        %v2869 = vadd.f32 %v2867, %v2868
        %v2870 = vsel %vm2636, %v2826, 0.0
        %v2871 = vadd.f32 %v2869, %v2870
        %v2872 = vsel %vm2636, %v2827, 0.0
        %v2873 = vadd.f32 %v2871, %v2872
        %v2874 = vsel %vm2636, %v2828, 0.0
        %v2875 = vadd.f32 %v2873, %v2874
        %v2876 = vsel %vm2636, %v2829, 0.0
        %v2877 = vadd.f32 %v2875, %v2876
        %v2878 = vsel %vm2636, %v2830, 0.0
        %v2879 = vadd.f32 %v2877, %v2878
        %v2880 = vsel %vm2636, %v2831, 0.0
        %v2881 = vadd.f32 %v2879, %v2880
        %v2882 = vsel %vm2636, %v2832, 0.0
        %v2883 = vadd.f32 %v2881, %v2882
        %v2884 = vsel %vm2636, %v2833, 0.0
        %v2885 = vadd.f32 %v2883, %v2884
        %v2886 = vsel %vm2636, %v2834, 0.0
        %v2887 = vadd.f32 %v2885, %v2886
        %v2888 = vsel %vm2636, %v2835, 0.0
        %v2889 = vadd.f32 %v2887, %v2888
        %v2890 = vsel %vm2636, %v2836, 0.0
        %v2891 = vadd.f32 %v2889, %v2890
        %v2892 = vsel %vm2636, %v2837, 0.0
        %v2893 = vadd.f32 %v2891, %v2892
        %v2894 = vsel %vm2636, %v2838, 0.0
        %v2895 = vadd.f32 %v2893, %v2894
        %v2896 = vsel %vm2636, %v2839, 0.0
        %v2897 = vadd.f32 %v2895, %v2896
        %v2898 = vsel %vm2636, %v2840, 0.0
        %v2899 = vadd.f32 %v2897, %v2898
        %v2900 = vsel %vm2636, %v2841, 0.0
        %v2901 = vadd.f32 %v2899, %v2900
        %v2902 = vsel %vm2636, %v2842, 0.0
        %v2903 = vadd.f32 %v2901, %v2902
        %v2904 = vsel %vm2636, %v2843, 0.0
        %v2905 = vadd.f32 %v2903, %v2904
        %v2906 = vsel %vm2636, %v2844, 0.0
        %v2907 = vadd.f32 %v2905, %v2906
        %2908 = vadd.xlane.f32.xlu0 %v2907
        %v2909 = vpop.xlane.xlu0 %2908
        %v2910 = vrot.slane %v2909, 4
        %v2911 = vadd.f32 %v2909, %v2910
        %v2912 = vrot.slane %v2911, 2
        %v2913 = vadd.f32 %v2911, %v2912
        %v2914 = vrot.slane %v2913, 1
        %v2915 = vadd.f32 %v2913, %v2914
        %s2916 = vtos %v2915
        %vm2917 = vcmp.eq.s32.totalorder %v1547, 0
        %vm2918 = vcmp.eq.s32.totalorder %v1547, 1
        %vm2919 = vcmp.eq.s32.totalorder %v1547, 2
        %v2920 = vstv %s2916
        %v2921 = vsel %vm2919, %v2920, 0.0
        %v2922 = vstv %s2812
        %v2923 = vsel %vm2918, %v2922, %v2921
        %v2924 = vstv %s2708
        %v2925 = vsel %vm2917, %v2924, %v2923
        %2926 = vst [vmem:[%s296] sm:$0xff] %v2925
        %s2927 = smul.u32 32, %s22
        %p2928 = scmp.lt.s32.totalorder %s2927, 127
        %s2929 = scalar_select %p2928, %s2927, 127
        %s2930 = smul.addr %s2929, 8
        %s2931 = scalar_lea.vmem %s6, %s2930
        %s2932 = sand.u32 %s192, 1
        %s2933 = scalar_lea.sflag [#allocation3], %s2932
        %s2934 = sand.u32 %s192, 1
        %s2935 = smul.addr %s2934, 8
        %s2936 = scalar_lea.vmem [#allocation2], %s2935
        // Predicated region
        $region45: #{tpu_custom_call.1} parent=43 // pred_check
          %p2937 = pneg %p176
        $region46: #{tpu_custom_call.1} parent=43 // pred_check_branch
          %2939 = sbr.rel (%p2937) target = $region48
        $region47: #{tpu_custom_call.1} parent=43 // pred_region
          %s2940 = smul.u32 32, %s22
        $region48: #{tpu_custom_call.1} parent=43 // pred_fallthru
          _
        // Predicated region
        $region49: #{tpu_custom_call.1} parent=43 // pred_check
          %p2941 = pneg %p202
        $region50: #{tpu_custom_call.1} parent=43 // pred_check_branch
          %2943 = sbr.rel (%p2941) target = $region52
        $region51: #{tpu_custom_call.1} parent=43 // pred_region
          %s2945 = ssub.s32 128, 128
          %2946 = vsyncadd %s2933, %s2945
          %s2947 = smul.addr %s22, 128
          %s2948 = scalar_lea.hbm %s7, %s2947
          %s2950 = sshll.u32 %s2936, 4
          %s2951 = int_to_ptr.vmem [resolvable:$true] %s2950
          %2953 = dma.vmem_to_hbm [thread:$0]  %s2951, 128, %s2948, %s2933
        $region52: #{tpu_custom_call.1} parent=43 // pred_fallthru
          _
      $region44: #{tpu_custom_call.1} parent=5 // pred_fallthru
        _
      %p2954 = scmp.le.s32.totalorder 2, %s17
      // Predicated region
      $region53: #{tpu_custom_call.1} parent=5 // pred_check
        %p2955 = pneg %p2954
      $region54: #{tpu_custom_call.1} parent=5 // pred_check_branch
        %2957 = sbr.rel (%p2955) target = $region56
      $region55: #{tpu_custom_call.1} parent=5 // pred_region
        %s2958 = ssub.s32 %s17, 2
        // Predicated region
        $region57: #{tpu_custom_call.1} parent=55 // pred_check
          %p2959 = pneg %p182
        $region58: #{tpu_custom_call.1} parent=55 // pred_check_branch
          %2961 = sbr.rel (%p2959) target = $region60
        $region59: #{tpu_custom_call.1} parent=55 // pred_region
          %s2962 = smul.u32 32, %s23
          %p2963 = scmp.lt.s32.totalorder %s2962, 127
          %s2964 = scalar_select %p2963, %s2962, 127
          %s2965 = smul.addr %s2964, 8
          %s2966 = scalar_lea.vmem %s6, %s2965
        $region60: #{tpu_custom_call.1} parent=55 // pred_fallthru
          _
        // Predicated region
        $region61: #{tpu_custom_call.1} parent=55 // pred_check
          %p2967 = pneg %p208
        $region62: #{tpu_custom_call.1} parent=55 // pred_check_branch
          %2969 = sbr.rel (%p2967) target = $region64
        $region63: #{tpu_custom_call.1} parent=55 // pred_region
          %s2970 = sand.u32 %s193, 1
          %s2971 = scalar_lea.sflag [#allocation3], %s2970
          %s2972 = sand.u32 %s193, 1
          %s2973 = smul.addr %s2972, 8
          %s2974 = scalar_lea.vmem [#allocation2], %s2973
          %2975 = dma.done %s2971, 128
        $region64: #{tpu_custom_call.1} parent=55 // pred_fallthru
          _
      $region56: #{tpu_custom_call.1} parent=5 // pred_fallthru
        _
    $region6: #{tpu_custom_call.1} parent=1 // loop_footer
      %s21 = sadd.s32 1, %s17
    $region7: #{tpu_custom_call.1} parent=1 // loop_footer_branch
      %16 = sbr.rel target = $region3
    $region8: #{tpu_custom_call.1} parent=1 // loop_exit
      _
    %2976 = vsyncpa [#allocation3], 1
    %s2977 = scalar_lea.sflag [#allocation3], 1
    %2978 = vsyncpa %s2977, 1

</llo_original>
